<compile_context>
chip_gen: v7x
topology: tpu7x:2x2x1
jax: 0.10.0
libtpu: 0.0.40
codegen_flags: <defaults>
</compile_context>

<pallas_src>
import functools
import math

import jax
import jax.numpy as jnp
import numpy as np
from jax.experimental import pallas as pl
from jax.experimental.pallas import tpu as pltpu


def decoupled_mha_kernel(
    tgt_ref, pos_tgt_ref, mem_ref, pos_mem_ref,
    w_stack_ref, w_final_ref, bias_ref,
    o_ref, *, num_heads, batch_block, n_tgt, n_mem,
):
    Bb, N, M, H = batch_block, n_tgt, n_mem, num_heads
    D = tgt_ref.shape[-1]
    E = w_stack_ref.shape[-1]
    hd = E // H

    f32 = jnp.float32
    bf16 = jnp.bfloat16

    # ---- fused projections on flattened (Bb*rows, .) activations -----------
    # [x | pos_x] lane-concat (D is a multiple of 128 -> aligned copy), then a
    # single K=2D contraction per projection.  bf16 operands, f32 accumulation.
    q_in = jnp.concatenate(
        [tgt_ref[...].astype(bf16), pos_tgt_ref[...].astype(bf16)], axis=-1)  # [Bb*N, 2D]
    k_in = jnp.concatenate(
        [mem_ref[...].astype(bf16), pos_mem_ref[...].astype(bf16)], axis=-1)  # [Bb*M, 2D]
    v_in = mem_ref[...].astype(bf16)                                          # [Bb*M, D]

    # Stacked weight slab: rows [0:2D]=wq^T (pre-scaled by 1/sqrt(hd)),
    # [2D:4D]=wk^T, [4D:5D]=wv_eff^T (value_linear folded in).  Static row
    # slices on the ref -> direct VMEM loads, no relayout.
    wq = w_stack_ref[0:2 * D, :]
    wk = w_stack_ref[2 * D:4 * D, :]
    wv = w_stack_ref[4 * D:5 * D, :]

    bq = bias_ref[0:1, :]                 # [1, E] f32 (pre-scaled)
    bk = bias_ref[1:2, :]
    bv = bias_ref[2:3, :]
    b_final = bias_ref[3:4, :D]           # [1, D] out_proj bias folded thru query_linear

    q = jnp.dot(q_in, wq, preferred_element_type=f32) + bq    # [Bb*N, E]
    k = jnp.dot(k_in, wk, preferred_element_type=f32) + bk    # [Bb*M, E]
    v = jnp.dot(v_in, wv, preferred_element_type=f32) + bv    # [Bb*M, E]

    q16, k16, v16 = q.astype(bf16), k.astype(bf16), v.astype(bf16)

    # ---- per-batch-element, per-head attention (softmax in f32) ------------
    # Static unroll over Bb and H; every row/column slice below is a multiple
    # of (8, 128) so no tile-crossing copies are generated.
    ctx_blocks = []
    for b in range(Bb):
        qb = q16[b * N:(b + 1) * N, :]
        kb = k16[b * M:(b + 1) * M, :]
        vb = v16[b * M:(b + 1) * M, :]
        head_blocks = []
        for h in range(H):
            qh = qb[:, h * hd:(h + 1) * hd]
            kh = kb[:, h * hd:(h + 1) * hd]
            vh = vb[:, h * hd:(h + 1) * hd]
            # q already carries the 1/sqrt(hd) attention scale (folded into wq).
            s = jax.lax.dot_general(qh, kh, (((1,), (1,)), ((), ())),
                                    preferred_element_type=f32)       # [N, M]
            s = s - jnp.max(s, axis=-1, keepdims=True)
            p = jnp.exp(s)
            p = p * pl.reciprocal(jnp.sum(p, axis=-1, keepdims=True), approx=True)
            head_blocks.append(
                jnp.dot(p.astype(bf16), vh, preferred_element_type=f32))  # [N, hd]
        ctx_blocks.append(jnp.concatenate(head_blocks, axis=-1))          # [N, E]

    # Lane-dense [Bb*N, E] context -> single full-depth matmul against the
    # fused (out_proj . query_linear) weight (no per-head accumulation chain).
    ctx = jnp.concatenate(ctx_blocks, axis=0).astype(bf16)                # [Bb*N, E]
    out = jnp.dot(ctx, w_final_ref[...], preferred_element_type=f32) + b_final
    o_ref[...] = out.astype(o_ref.dtype)


def _fold_params(params, num_heads):
    """Host-side algebraic folding / transposition (in f32, then cast to bf16)."""
    w_value = params["w_value"].astype(jnp.float32)   # [E, D]  value_linear.weight
    w_query = params["w_query"].astype(jnp.float32)   # [D, E]  query_linear.weight
    w_in = params["w_in"].astype(jnp.float32)         # [3E, E] attn.in_proj_weight
    b_in = params["b_in"].astype(jnp.float32)         # [1, 3E] attn.in_proj_bias
    w_out = params["w_out"].astype(jnp.float32)       # [E, E]  attn.out_proj.weight
    b_out = params["b_out"].astype(jnp.float32)       # [1, E]  attn.out_proj.bias

    E = w_out.shape[0]
    D = w_value.shape[1]
    hd = E // num_heads
    scale = 1.0 / math.sqrt(hd)

    wq = w_in[:E]          # acts on cat([tgt, pos_tgt]) of width 2D == E
    wk = w_in[E:2 * E]
    wv = w_in[2 * E:]

    # All weights pre-transposed so every in-kernel dot is act[R,K] @ w[K,C].
    wq_t = (wq * scale).T              # [2D, E], attention scale folded in
    wk_t = wk.T                        # [2D, E]
    wv_eff = (wv @ w_value).T          # [D, E], value_linear folded into in_proj v
    w_stack = jnp.concatenate([wq_t, wk_t, wv_eff], axis=0)   # [5D, E]

    w_final = (w_query @ w_out).T      # [E, D], out_proj folded into query_linear
    b_final = (b_out @ w_query.T)[0]   # [D]

    bias = jnp.zeros((8, E), jnp.float32)            # one padded bias slab
    bias = bias.at[0, :].set(b_in[0, :E] * scale)    # bq (pre-scaled)
    bias = bias.at[1, :].set(b_in[0, E:2 * E])       # bk
    bias = bias.at[2, :].set(b_in[0, 2 * E:])        # bv
    bias = bias.at[3, :D].set(b_final)               # folded out_proj bias

    return {
        "w_stack": w_stack.astype(jnp.bfloat16),
        "w_final": w_final.astype(jnp.bfloat16),
        "bias": bias,                                 # f32 (added after f32 accum)
    }


def decoupled_mha(tgt, pos_tgt, memory, pos_memory, params, *, num_heads,
                  batch_block=None):
    if memory is None:
        memory = tgt
    if pos_memory is None:
        pos_memory = pos_tgt

    B, N, D = tgt.shape
    M = memory.shape[1]
    E = params["w_out"].shape[0]
    assert E == 2 * D
    assert E % num_heads == 0
    hd = E // num_heads
    # Layout contract: per-head column slices must land on lane-tile boundaries.
    assert D % 128 == 0, "query_dim must be a multiple of 128"
    assert hd % 128 == 0, "head_dim (2*query_dim/num_heads) must be a multiple of 128"

    # Batch blocking: default keeps the grid length at 2 (both v7x TensorCores
    # busy) while flattening Bb*N / Bb*M rows per step for the projections.
    if batch_block is None:
        batch_block = B // 2 if (B % 2 == 0 and B > 1) else B
    Bb = batch_block
    assert B % Bb == 0
    assert (Bb * N) % 8 == 0 and (Bb * M) % 8 == 0, "Bb*N and Bb*M must be multiples of 8"
    grid = (B // Bb,)

    fp = _fold_params(params, num_heads)

    # Free host-side reshapes: hand the kernel flat 2D (rows, lanes) slabs.
    tgt2 = tgt.reshape(B * N, D)
    pos_tgt2 = pos_tgt.reshape(B * N, D)
    mem2 = memory.reshape(B * M, D)
    pos_mem2 = pos_memory.reshape(B * M, D)

    kernel = functools.partial(decoupled_mha_kernel, num_heads=num_heads,
                               batch_block=Bb, n_tgt=N, n_mem=M)

    row_spec = lambda rows: pl.BlockSpec((Bb * rows, D), lambda i: (i, 0))
    const_spec = lambda shape: pl.BlockSpec(shape, lambda i: (0, 0))

    flops = 2 * B * (N * 2 * D * E        # q projection
                     + M * 2 * D * E      # k projection
                     + M * D * E          # v projection (value_linear folded)
                     + 2 * N * M * E      # scores + PV (all heads)
                     + N * E * D)         # fused out_proj . query_linear
    transcendentals = B * num_heads * N * M
    bytes_accessed = int(
        4 * (2 * B * N * D + 2 * B * M * D + B * N * D)
        + 2 * (fp["w_stack"].size + fp["w_final"].size)
        + 4 * fp["bias"].size)

    out2 = pl.pallas_call(
        kernel,
        out_shape=jax.ShapeDtypeStruct((B * N, D), tgt.dtype),
        grid_spec=pltpu.PrefetchScalarGridSpec(
            num_scalar_prefetch=0,
            grid=grid,
            in_specs=[
                row_spec(N),               # tgt       [B*N, D]
                row_spec(N),               # pos_tgt   [B*N, D]
                row_spec(M),               # memory    [B*M, D]
                row_spec(M),               # pos_memory[B*M, D]
                const_spec((5 * D, E)),    # stacked wq|wk|wv_eff (bf16)
                const_spec((E, D)),        # fused out_proj . query_linear (bf16)
                const_spec((8, E)),        # bias slab (f32)
            ],
            out_specs=pl.BlockSpec((Bb * N, D), lambda i: (i, 0)),
        ),
        compiler_params=pltpu.CompilerParams(
            dimension_semantics=("parallel",),
        ),
        cost_estimate=pl.CostEstimate(
            flops=flops,
            transcendentals=transcendentals,
            bytes_accessed=bytes_accessed),
    )(tgt2, pos_tgt2, mem2, pos_mem2, fp["w_stack"], fp["w_final"], fp["bias"])

    return out2.reshape(B, N, D)


def reference(tgt, pos_tgt, memory, pos_memory, params, *, num_heads):
    """Pure-JAX f32 reference matching PyTorch nn.MultiheadAttention (eval), unfolded."""
    v = jnp.einsum("bmd,ed->bme", memory, params["w_value"])
    q_in = jnp.concatenate([tgt, pos_tgt], axis=-1)
    k_in = jnp.concatenate([memory, pos_memory], axis=-1)
    E = q_in.shape[-1]
    w_in = params["w_in"]
    b_in = params["b_in"][0]
    q = jnp.einsum("bne,fe->bnf", q_in, w_in[:E]) + b_in[:E]
    k = jnp.einsum("bme,fe->bmf", k_in, w_in[E:2 * E]) + b_in[E:2 * E]
    vv = jnp.einsum("bme,fe->bmf", v, w_in[2 * E:]) + b_in[2 * E:]
    B, N, _ = q.shape
    M = k.shape[1]
    H = num_heads
    hd = E // H
    qh = q.reshape(B, N, H, hd).transpose(0, 2, 1, 3)
    kh = k.reshape(B, M, H, hd).transpose(0, 2, 1, 3)
    vh = vv.reshape(B, M, H, hd).transpose(0, 2, 1, 3)
    s = jnp.einsum("bhnd,bhmd->bhnm", qh, kh) / jnp.sqrt(jnp.float32(hd))
    p = jax.nn.softmax(s, axis=-1)
    ctx = jnp.einsum("bhnm,bhmd->bhnd", p, vh).transpose(0, 2, 1, 3).reshape(B, N, E)
    attn_out = jnp.einsum("bne,fe->bnf", ctx, params["w_out"]) + params["b_out"][0]
    return jnp.einsum("bne,de->bnd", attn_out, params["w_query"])


def make_params(key, query_dim):
    D = query_dim
    E = 2 * D
    ks = jax.random.split(key, 6)

    def xavier(k, shape):
        fan_out, fan_in = shape
        std = math.sqrt(2.0 / (fan_in + fan_out))
        return jax.random.normal(k, shape, jnp.float32) * std

    return {
        "w_value": xavier(ks[0], (E, D)),        # value_linear.weight
        "w_query": xavier(ks[1], (D, E)),        # query_linear.weight
        "w_in": xavier(ks[2], (3 * E, E)),       # attn.in_proj_weight
        "b_in": 0.1 * jax.random.normal(ks[3], (1, 3 * E), jnp.float32),
        "w_out": xavier(ks[4], (E, E)),          # attn.out_proj.weight
        "b_out": 0.1 * jax.random.normal(ks[5], (1, E), jnp.float32),
    }


if __name__ == "__main__":
    # Small config consistent with the module: query_dim D, embed E = 2D,
    # num_heads divides E, hd = E/H = 128 keeps all head slices lane-aligned.
    # B=8 with the default batch_block=4 gives grid=(2,), 64 query rows and
    # 128 memory rows flattened per grid step.
    B, N, M, D = 8, 16, 32, 128
    NUM_HEADS = 2

    key = jax.random.PRNGKey(0)
    k_p, k_t, k_pt, k_m, k_pm = jax.random.split(key, 5)
    params = make_params(k_p, D)

    tgt = jax.random.normal(k_t, (B, N, D), jnp.float32)
    pos_tgt = jax.random.normal(k_pt, (B, N, D), jnp.float32)
    memory = jax.random.normal(k_m, (B, M, D), jnp.float32)
    pos_memory = jax.random.normal(k_pm, (B, M, D), jnp.float32)

    out = decoupled_mha(tgt, pos_tgt, memory, pos_memory, params,
                        num_heads=NUM_HEADS)
    out = jax.block_until_ready(out)

    ref = reference(tgt, pos_tgt, memory, pos_memory, params,
                    num_heads=NUM_HEADS)
    ref = jax.block_until_ready(ref)

    # Tolerance covers bf16 MXU operands (f32 accumulation), the approx EUP
    # reciprocal in the softmax, and the changed rounding order from the
    # host-side weight foldings.
    np.testing.assert_allclose(np.asarray(out), np.asarray(ref),
                               rtol=1e-2, atol=1e-2)
    print("KERNEL_OK")
</pallas_src>

<mosaic_0001>
module attributes {stable_mosaic.version = 11 : i64} {
  func.func @decoupled_mha_kernel(%arg0: i32, %arg1: memref<64x128xf32, #tpu.memory_space<vmem>>, %arg2: memref<64x128xf32, #tpu.memory_space<vmem>>, %arg3: memref<128x128xf32, #tpu.memory_space<vmem>>, %arg4: memref<128x128xf32, #tpu.memory_space<vmem>>, %arg5: memref<640x256xbf16, #tpu.memory_space<vmem>>, %arg6: memref<256x128xbf16, #tpu.memory_space<vmem>>, %arg7: memref<8x256xf32, #tpu.memory_space<vmem>>, %arg8: memref<64x128xf32, #tpu.memory_space<vmem>>) attributes {dimension_semantics = [#tpu.dimension_semantics<parallel>], iteration_bounds = array<i64: 2>, scalar_prefetch = 0 : i64, scratch_operands = 0 : i64, tpu.core_type = #tpu.core_type<tc>, window_params = [{transform_indices = @transform_0, window_bounds = array<i64: 64, 128>}, {transform_indices = @transform_1, window_bounds = array<i64: 64, 128>}, {transform_indices = @transform_2, window_bounds = array<i64: 128, 128>}, {transform_indices = @transform_3, window_bounds = array<i64: 128, 128>}, {pipeline_mode = #tpu.pipeline_mode<synchronous>, transform_indices = @transform_4, window_bounds = array<i64: 640, 256>}, {pipeline_mode = #tpu.pipeline_mode<synchronous>, transform_indices = @transform_5, window_bounds = array<i64: 256, 128>}, {pipeline_mode = #tpu.pipeline_mode<synchronous>, transform_indices = @transform_6, window_bounds = array<i64: 8, 256>}, {transform_indices = @transform_7, window_bounds = array<i64: 64, 128>}]} {
    %c0 = arith.constant 0 : index
    %c0_0 = arith.constant 0 : index
    %0 = vector.load %arg1[%c0, %c0_0] : memref<64x128xf32, #tpu.memory_space<vmem>>, vector<64x128xf32>
    %1 = arith.truncf %0 : vector<64x128xf32> to vector<64x128xbf16>
    %c0_1 = arith.constant 0 : index
    %c0_2 = arith.constant 0 : index
    %2 = vector.load %arg2[%c0_1, %c0_2] : memref<64x128xf32, #tpu.memory_space<vmem>>, vector<64x128xf32>
    %3 = arith.truncf %2 : vector<64x128xf32> to vector<64x128xbf16>
    %4 = tpu.concatenate %1, %3 in 1 : vector<64x128xbf16>, vector<64x128xbf16> -> vector<64x256xbf16>
    %c0_3 = arith.constant 0 : index
    %c0_4 = arith.constant 0 : index
    %5 = vector.load %arg3[%c0_3, %c0_4] : memref<128x128xf32, #tpu.memory_space<vmem>>, vector<128x128xf32>
    %6 = arith.truncf %5 : vector<128x128xf32> to vector<128x128xbf16>
    %c0_5 = arith.constant 0 : index
    %c0_6 = arith.constant 0 : index
    %7 = vector.load %arg4[%c0_5, %c0_6] : memref<128x128xf32, #tpu.memory_space<vmem>>, vector<128x128xf32>
    %8 = arith.truncf %7 : vector<128x128xf32> to vector<128x128xbf16>
    %9 = tpu.concatenate %6, %8 in 1 : vector<128x128xbf16>, vector<128x128xbf16> -> vector<128x256xbf16>
    %c0_7 = arith.constant 0 : index
    %c0_8 = arith.constant 0 : index
    %10 = vector.load %arg3[%c0_7, %c0_8] : memref<128x128xf32, #tpu.memory_space<vmem>>, vector<128x128xf32>
    %11 = arith.truncf %10 : vector<128x128xf32> to vector<128x128xbf16>
    %c0_9 = arith.constant 0 : index
    %c0_10 = arith.constant 0 : index
    %12 = vector.load %arg5[%c0_9, %c0_10] : memref<640x256xbf16, #tpu.memory_space<vmem>>, vector<256x256xbf16>
    %c256 = arith.constant 256 : index
    %c0_11 = arith.constant 0 : index
    %13 = vector.load %arg5[%c256, %c0_11] : memref<640x256xbf16, #tpu.memory_space<vmem>>, vector<256x256xbf16>
    %c512 = arith.constant 512 : index
    %c0_12 = arith.constant 0 : index
    %14 = vector.load %arg5[%c512, %c0_12] : memref<640x256xbf16, #tpu.memory_space<vmem>>, vector<128x256xbf16>
    %c0_13 = arith.constant 0 : index
    %c0_14 = arith.constant 0 : index
    %15 = vector.load %arg7[%c0_13, %c0_14] : memref<8x256xf32, #tpu.memory_space<vmem>>, vector<1x256xf32>
    %c1 = arith.constant 1 : index
    %c0_15 = arith.constant 0 : index
    %16 = vector.load %arg7[%c1, %c0_15] : memref<8x256xf32, #tpu.memory_space<vmem>>, vector<1x256xf32>
    %c2 = arith.constant 2 : index
    %c0_16 = arith.constant 0 : index
    %17 = vector.load %arg7[%c2, %c0_16] : memref<8x256xf32, #tpu.memory_space<vmem>>, vector<1x256xf32>
    %c3 = arith.constant 3 : index
    %c0_17 = arith.constant 0 : index
    %18 = vector.load %arg7[%c3, %c0_17] : memref<8x256xf32, #tpu.memory_space<vmem>>, vector<1x128xf32>
    %cst = arith.constant dense<0.000000e+00> : vector<64x256xf32>
    %19 = tpu.matmul %4, %12, %cst {dimension_numbers = #tpu.dot_dimension_numbers<[1], [0], [0], [1], [0, 0, 1, 1], [], []>} : vector<64x256xbf16>, vector<256x256xbf16>, vector<64x256xf32> -> vector<64x256xf32>
    %20 = vector.broadcast %15 : vector<1x256xf32> to vector<64x256xf32>
    %21 = arith.addf %19, %20 : vector<64x256xf32>
    %cst_18 = arith.constant dense<0.000000e+00> : vector<128x256xf32>
    %22 = tpu.matmul %9, %13, %cst_18 {dimension_numbers = #tpu.dot_dimension_numbers<[1], [0], [0], [1], [0, 0, 1, 1], [], []>} : vector<128x256xbf16>, vector<256x256xbf16>, vector<128x256xf32> -> vector<128x256xf32>
    %23 = vector.broadcast %16 : vector<1x256xf32> to vector<128x256xf32>
    %24 = arith.addf %22, %23 : vector<128x256xf32>
    %cst_19 = arith.constant dense<0.000000e+00> : vector<128x256xf32>
    %25 = tpu.matmul %11, %14, %cst_19 {dimension_numbers = #tpu.dot_dimension_numbers<[1], [0], [0], [1], [0, 0, 1, 1], [], []>} : vector<128x128xbf16>, vector<128x256xbf16>, vector<128x256xf32> -> vector<128x256xf32>
    %26 = vector.broadcast %17 : vector<1x256xf32> to vector<128x256xf32>
    %27 = arith.addf %25, %26 : vector<128x256xf32>
    %28 = arith.truncf %21 : vector<64x256xf32> to vector<64x256xbf16>
    %29 = arith.truncf %24 : vector<128x256xf32> to vector<128x256xbf16>
    %30 = arith.truncf %27 : vector<128x256xf32> to vector<128x256xbf16>
    %31 = vector.extract_strided_slice %28 {offsets = [0, 0], sizes = [16, 256], strides = [1, 1]} : vector<64x256xbf16> to vector<16x256xbf16>
    %32 = vector.extract_strided_slice %29 {offsets = [0, 0], sizes = [32, 256], strides = [1, 1]} : vector<128x256xbf16> to vector<32x256xbf16>
    %33 = vector.extract_strided_slice %30 {offsets = [0, 0], sizes = [32, 256], strides = [1, 1]} : vector<128x256xbf16> to vector<32x256xbf16>
    %34 = vector.extract_strided_slice %31 {offsets = [0, 0], sizes = [16, 128], strides = [1, 1]} : vector<16x256xbf16> to vector<16x128xbf16>
    %35 = vector.extract_strided_slice %32 {offsets = [0, 0], sizes = [32, 128], strides = [1, 1]} : vector<32x256xbf16> to vector<32x128xbf16>
    %36 = vector.extract_strided_slice %33 {offsets = [0, 0], sizes = [32, 128], strides = [1, 1]} : vector<32x256xbf16> to vector<32x128xbf16>
    %cst_20 = arith.constant dense<0.000000e+00> : vector<16x32xf32>
    %37 = tpu.matmul %34, %35, %cst_20 {dimension_numbers = #tpu.dot_dimension_numbers<[1], [1], [0], [0], [0, 0, 1, 0], [], []>} : vector<16x128xbf16>, vector<32x128xbf16>, vector<16x32xf32> -> vector<16x32xf32>
    %cst_21 = arith.constant dense<0xFF800000> : vector<16xf32>
    %38 = vector.multi_reduction <maximumf>, %37, %cst_21 [1] : vector<16x32xf32> to vector<16xf32>
    %39 = vector.shape_cast %38 : vector<16xf32> to vector<16x1xf32>
    %40 = vector.broadcast %39 : vector<16x1xf32> to vector<16x32xf32>
    %41 = arith.subf %37, %40 : vector<16x32xf32>
    %42 = math.exp %41 : vector<16x32xf32>
    %cst_22 = arith.constant dense<0.000000e+00> : vector<16xf32>
    %43 = vector.multi_reduction <add>, %42, %cst_22 [1] : vector<16x32xf32> to vector<16xf32>
    %44 = vector.shape_cast %43 : vector<16xf32> to vector<16x1xf32>
    %45 = tpu.reciprocal %44 {approx = true} : vector<16x1xf32> -> vector<16x1xf32>
    %46 = vector.broadcast %45 : vector<16x1xf32> to vector<16x32xf32>
    %47 = arith.mulf %42, %46 : vector<16x32xf32>
    %48 = arith.truncf %47 : vector<16x32xf32> to vector<16x32xbf16>
    %cst_23 = arith.constant dense<0.000000e+00> : vector<16x128xf32>
    %49 = tpu.matmul %48, %36, %cst_23 {dimension_numbers = #tpu.dot_dimension_numbers<[1], [0], [0], [1], [0, 0, 1, 1], [], []>} : vector<16x32xbf16>, vector<32x128xbf16>, vector<16x128xf32> -> vector<16x128xf32>
    %50 = vector.extract_strided_slice %31 {offsets = [0, 128], sizes = [16, 128], strides = [1, 1]} : vector<16x256xbf16> to vector<16x128xbf16>
    %51 = vector.extract_strided_slice %32 {offsets = [0, 128], sizes = [32, 128], strides = [1, 1]} : vector<32x256xbf16> to vector<32x128xbf16>
    %52 = vector.extract_strided_slice %33 {offsets = [0, 128], sizes = [32, 128], strides = [1, 1]} : vector<32x256xbf16> to vector<32x128xbf16>
    %cst_24 = arith.constant dense<0.000000e+00> : vector<16x32xf32>
    %53 = tpu.matmul %50, %51, %cst_24 {dimension_numbers = #tpu.dot_dimension_numbers<[1], [1], [0], [0], [0, 0, 1, 0], [], []>} : vector<16x128xbf16>, vector<32x128xbf16>, vector<16x32xf32> -> vector<16x32xf32>
    %cst_25 = arith.constant dense<0xFF800000> : vector<16xf32>
    %54 = vector.multi_reduction <maximumf>, %53, %cst_25 [1] : vector<16x32xf32> to vector<16xf32>
    %55 = vector.shape_cast %54 : vector<16xf32> to vector<16x1xf32>
    %56 = vector.broadcast %55 : vector<16x1xf32> to vector<16x32xf32>
    %57 = arith.subf %53, %56 : vector<16x32xf32>
    %58 = math.exp %57 : vector<16x32xf32>
    %cst_26 = arith.constant dense<0.000000e+00> : vector<16xf32>
    %59 = vector.multi_reduction <add>, %58, %cst_26 [1] : vector<16x32xf32> to vector<16xf32>
    %60 = vector.shape_cast %59 : vector<16xf32> to vector<16x1xf32>
    %61 = tpu.reciprocal %60 {approx = true} : vector<16x1xf32> -> vector<16x1xf32>
    %62 = vector.broadcast %61 : vector<16x1xf32> to vector<16x32xf32>
    %63 = arith.mulf %58, %62 : vector<16x32xf32>
    %64 = arith.truncf %63 : vector<16x32xf32> to vector<16x32xbf16>
    %cst_27 = arith.constant dense<0.000000e+00> : vector<16x128xf32>
    %65 = tpu.matmul %64, %52, %cst_27 {dimension_numbers = #tpu.dot_dimension_numbers<[1], [0], [0], [1], [0, 0, 1, 1], [], []>} : vector<16x32xbf16>, vector<32x128xbf16>, vector<16x128xf32> -> vector<16x128xf32>
    %66 = tpu.concatenate %49, %65 in 1 : vector<16x128xf32>, vector<16x128xf32> -> vector<16x256xf32>
    %67 = vector.extract_strided_slice %28 {offsets = [16, 0], sizes = [16, 256], strides = [1, 1]} : vector<64x256xbf16> to vector<16x256xbf16>
    %68 = vector.extract_strided_slice %29 {offsets = [32, 0], sizes = [32, 256], strides = [1, 1]} : vector<128x256xbf16> to vector<32x256xbf16>
    %69 = vector.extract_strided_slice %30 {offsets = [32, 0], sizes = [32, 256], strides = [1, 1]} : vector<128x256xbf16> to vector<32x256xbf16>
    %70 = vector.extract_strided_slice %67 {offsets = [0, 0], sizes = [16, 128], strides = [1, 1]} : vector<16x256xbf16> to vector<16x128xbf16>
    %71 = vector.extract_strided_slice %68 {offsets = [0, 0], sizes = [32, 128], strides = [1, 1]} : vector<32x256xbf16> to vector<32x128xbf16>
    %72 = vector.extract_strided_slice %69 {offsets = [0, 0], sizes = [32, 128], strides = [1, 1]} : vector<32x256xbf16> to vector<32x128xbf16>
    %cst_28 = arith.constant dense<0.000000e+00> : vector<16x32xf32>
    %73 = tpu.matmul %70, %71, %cst_28 {dimension_numbers = #tpu.dot_dimension_numbers<[1], [1], [0], [0], [0, 0, 1, 0], [], []>} : vector<16x128xbf16>, vector<32x128xbf16>, vector<16x32xf32> -> vector<16x32xf32>
    %cst_29 = arith.constant dense<0xFF800000> : vector<16xf32>
    %74 = vector.multi_reduction <maximumf>, %73, %cst_29 [1] : vector<16x32xf32> to vector<16xf32>
    %75 = vector.shape_cast %74 : vector<16xf32> to vector<16x1xf32>
    %76 = vector.broadcast %75 : vector<16x1xf32> to vector<16x32xf32>
    %77 = arith.subf %73, %76 : vector<16x32xf32>
    %78 = math.exp %77 : vector<16x32xf32>
    %cst_30 = arith.constant dense<0.000000e+00> : vector<16xf32>
    %79 = vector.multi_reduction <add>, %78, %cst_30 [1] : vector<16x32xf32> to vector<16xf32>
    %80 = vector.shape_cast %79 : vector<16xf32> to vector<16x1xf32>
    %81 = tpu.reciprocal %80 {approx = true} : vector<16x1xf32> -> vector<16x1xf32>
    %82 = vector.broadcast %81 : vector<16x1xf32> to vector<16x32xf32>
    %83 = arith.mulf %78, %82 : vector<16x32xf32>
    %84 = arith.truncf %83 : vector<16x32xf32> to vector<16x32xbf16>
    %cst_31 = arith.constant dense<0.000000e+00> : vector<16x128xf32>
    %85 = tpu.matmul %84, %72, %cst_31 {dimension_numbers = #tpu.dot_dimension_numbers<[1], [0], [0], [1], [0, 0, 1, 1], [], []>} : vector<16x32xbf16>, vector<32x128xbf16>, vector<16x128xf32> -> vector<16x128xf32>
    %86 = vector.extract_strided_slice %67 {offsets = [0, 128], sizes = [16, 128], strides = [1, 1]} : vector<16x256xbf16> to vector<16x128xbf16>
    %87 = vector.extract_strided_slice %68 {offsets = [0, 128], sizes = [32, 128], strides = [1, 1]} : vector<32x256xbf16> to vector<32x128xbf16>
    %88 = vector.extract_strided_slice %69 {offsets = [0, 128], sizes = [32, 128], strides = [1, 1]} : vector<32x256xbf16> to vector<32x128xbf16>
    %cst_32 = arith.constant dense<0.000000e+00> : vector<16x32xf32>
    %89 = tpu.matmul %86, %87, %cst_32 {dimension_numbers = #tpu.dot_dimension_numbers<[1], [1], [0], [0], [0, 0, 1, 0], [], []>} : vector<16x128xbf16>, vector<32x128xbf16>, vector<16x32xf32> -> vector<16x32xf32>
    %cst_33 = arith.constant dense<0xFF800000> : vector<16xf32>
    %90 = vector.multi_reduction <maximumf>, %89, %cst_33 [1] : vector<16x32xf32> to vector<16xf32>
    %91 = vector.shape_cast %90 : vector<16xf32> to vector<16x1xf32>
    %92 = vector.broadcast %91 : vector<16x1xf32> to vector<16x32xf32>
    %93 = arith.subf %89, %92 : vector<16x32xf32>
    %94 = math.exp %93 : vector<16x32xf32>
    %cst_34 = arith.constant dense<0.000000e+00> : vector<16xf32>
    %95 = vector.multi_reduction <add>, %94, %cst_34 [1] : vector<16x32xf32> to vector<16xf32>
    %96 = vector.shape_cast %95 : vector<16xf32> to vector<16x1xf32>
    %97 = tpu.reciprocal %96 {approx = true} : vector<16x1xf32> -> vector<16x1xf32>
    %98 = vector.broadcast %97 : vector<16x1xf32> to vector<16x32xf32>
    %99 = arith.mulf %94, %98 : vector<16x32xf32>
    %100 = arith.truncf %99 : vector<16x32xf32> to vector<16x32xbf16>
    %cst_35 = arith.constant dense<0.000000e+00> : vector<16x128xf32>
    %101 = tpu.matmul %100, %88, %cst_35 {dimension_numbers = #tpu.dot_dimension_numbers<[1], [0], [0], [1], [0, 0, 1, 1], [], []>} : vector<16x32xbf16>, vector<32x128xbf16>, vector<16x128xf32> -> vector<16x128xf32>
    %102 = tpu.concatenate %85, %101 in 1 : vector<16x128xf32>, vector<16x128xf32> -> vector<16x256xf32>
    %103 = vector.extract_strided_slice %28 {offsets = [32, 0], sizes = [16, 256], strides = [1, 1]} : vector<64x256xbf16> to vector<16x256xbf16>
    %104 = vector.extract_strided_slice %29 {offsets = [64, 0], sizes = [32, 256], strides = [1, 1]} : vector<128x256xbf16> to vector<32x256xbf16>
    %105 = vector.extract_strided_slice %30 {offsets = [64, 0], sizes = [32, 256], strides = [1, 1]} : vector<128x256xbf16> to vector<32x256xbf16>
    %106 = vector.extract_strided_slice %103 {offsets = [0, 0], sizes = [16, 128], strides = [1, 1]} : vector<16x256xbf16> to vector<16x128xbf16>
    %107 = vector.extract_strided_slice %104 {offsets = [0, 0], sizes = [32, 128], strides = [1, 1]} : vector<32x256xbf16> to vector<32x128xbf16>
    %108 = vector.extract_strided_slice %105 {offsets = [0, 0], sizes = [32, 128], strides = [1, 1]} : vector<32x256xbf16> to vector<32x128xbf16>
    %cst_36 = arith.constant dense<0.000000e+00> : vector<16x32xf32>
    %109 = tpu.matmul %106, %107, %cst_36 {dimension_numbers = #tpu.dot_dimension_numbers<[1], [1], [0], [0], [0, 0, 1, 0], [], []>} : vector<16x128xbf16>, vector<32x128xbf16>, vector<16x32xf32> -> vector<16x32xf32>
    %cst_37 = arith.constant dense<0xFF800000> : vector<16xf32>
    %110 = vector.multi_reduction <maximumf>, %109, %cst_37 [1] : vector<16x32xf32> to vector<16xf32>
    %111 = vector.shape_cast %110 : vector<16xf32> to vector<16x1xf32>
    %112 = vector.broadcast %111 : vector<16x1xf32> to vector<16x32xf32>
    %113 = arith.subf %109, %112 : vector<16x32xf32>
    %114 = math.exp %113 : vector<16x32xf32>
    %cst_38 = arith.constant dense<0.000000e+00> : vector<16xf32>
    %115 = vector.multi_reduction <add>, %114, %cst_38 [1] : vector<16x32xf32> to vector<16xf32>
    %116 = vector.shape_cast %115 : vector<16xf32> to vector<16x1xf32>
    %117 = tpu.reciprocal %116 {approx = true} : vector<16x1xf32> -> vector<16x1xf32>
    %118 = vector.broadcast %117 : vector<16x1xf32> to vector<16x32xf32>
    %119 = arith.mulf %114, %118 : vector<16x32xf32>
    %120 = arith.truncf %119 : vector<16x32xf32> to vector<16x32xbf16>
    %cst_39 = arith.constant dense<0.000000e+00> : vector<16x128xf32>
    %121 = tpu.matmul %120, %108, %cst_39 {dimension_numbers = #tpu.dot_dimension_numbers<[1], [0], [0], [1], [0, 0, 1, 1], [], []>} : vector<16x32xbf16>, vector<32x128xbf16>, vector<16x128xf32> -> vector<16x128xf32>
    %122 = vector.extract_strided_slice %103 {offsets = [0, 128], sizes = [16, 128], strides = [1, 1]} : vector<16x256xbf16> to vector<16x128xbf16>
    %123 = vector.extract_strided_slice %104 {offsets = [0, 128], sizes = [32, 128], strides = [1, 1]} : vector<32x256xbf16> to vector<32x128xbf16>
    %124 = vector.extract_strided_slice %105 {offsets = [0, 128], sizes = [32, 128], strides = [1, 1]} : vector<32x256xbf16> to vector<32x128xbf16>
    %cst_40 = arith.constant dense<0.000000e+00> : vector<16x32xf32>
    %125 = tpu.matmul %122, %123, %cst_40 {dimension_numbers = #tpu.dot_dimension_numbers<[1], [1], [0], [0], [0, 0, 1, 0], [], []>} : vector<16x128xbf16>, vector<32x128xbf16>, vector<16x32xf32> -> vector<16x32xf32>
    %cst_41 = arith.constant dense<0xFF800000> : vector<16xf32>
    %126 = vector.multi_reduction <maximumf>, %125, %cst_41 [1] : vector<16x32xf32> to vector<16xf32>
    %127 = vector.shape_cast %126 : vector<16xf32> to vector<16x1xf32>
    %128 = vector.broadcast %127 : vector<16x1xf32> to vector<16x32xf32>
    %129 = arith.subf %125, %128 : vector<16x32xf32>
    %130 = math.exp %129 : vector<16x32xf32>
    %cst_42 = arith.constant dense<0.000000e+00> : vector<16xf32>
    %131 = vector.multi_reduction <add>, %130, %cst_42 [1] : vector<16x32xf32> to vector<16xf32>
    %132 = vector.shape_cast %131 : vector<16xf32> to vector<16x1xf32>
    %133 = tpu.reciprocal %132 {approx = true} : vector<16x1xf32> -> vector<16x1xf32>
    %134 = vector.broadcast %133 : vector<16x1xf32> to vector<16x32xf32>
    %135 = arith.mulf %130, %134 : vector<16x32xf32>
    %136 = arith.truncf %135 : vector<16x32xf32> to vector<16x32xbf16>
    %cst_43 = arith.constant dense<0.000000e+00> : vector<16x128xf32>
    %137 = tpu.matmul %136, %124, %cst_43 {dimension_numbers = #tpu.dot_dimension_numbers<[1], [0], [0], [1], [0, 0, 1, 1], [], []>} : vector<16x32xbf16>, vector<32x128xbf16>, vector<16x128xf32> -> vector<16x128xf32>
    %138 = tpu.concatenate %121, %137 in 1 : vector<16x128xf32>, vector<16x128xf32> -> vector<16x256xf32>
    %139 = vector.extract_strided_slice %28 {offsets = [48, 0], sizes = [16, 256], strides = [1, 1]} : vector<64x256xbf16> to vector<16x256xbf16>
    %140 = vector.extract_strided_slice %29 {offsets = [96, 0], sizes = [32, 256], strides = [1, 1]} : vector<128x256xbf16> to vector<32x256xbf16>
    %141 = vector.extract_strided_slice %30 {offsets = [96, 0], sizes = [32, 256], strides = [1, 1]} : vector<128x256xbf16> to vector<32x256xbf16>
    %142 = vector.extract_strided_slice %139 {offsets = [0, 0], sizes = [16, 128], strides = [1, 1]} : vector<16x256xbf16> to vector<16x128xbf16>
    %143 = vector.extract_strided_slice %140 {offsets = [0, 0], sizes = [32, 128], strides = [1, 1]} : vector<32x256xbf16> to vector<32x128xbf16>
    %144 = vector.extract_strided_slice %141 {offsets = [0, 0], sizes = [32, 128], strides = [1, 1]} : vector<32x256xbf16> to vector<32x128xbf16>
    %cst_44 = arith.constant dense<0.000000e+00> : vector<16x32xf32>
    %145 = tpu.matmul %142, %143, %cst_44 {dimension_numbers = #tpu.dot_dimension_numbers<[1], [1], [0], [0], [0, 0, 1, 0], [], []>} : vector<16x128xbf16>, vector<32x128xbf16>, vector<16x32xf32> -> vector<16x32xf32>
    %cst_45 = arith.constant dense<0xFF800000> : vector<16xf32>
    %146 = vector.multi_reduction <maximumf>, %145, %cst_45 [1] : vector<16x32xf32> to vector<16xf32>
    %147 = vector.shape_cast %146 : vector<16xf32> to vector<16x1xf32>
    %148 = vector.broadcast %147 : vector<16x1xf32> to vector<16x32xf32>
    %149 = arith.subf %145, %148 : vector<16x32xf32>
    %150 = math.exp %149 : vector<16x32xf32>
    %cst_46 = arith.constant dense<0.000000e+00> : vector<16xf32>
    %151 = vector.multi_reduction <add>, %150, %cst_46 [1] : vector<16x32xf32> to vector<16xf32>
    %152 = vector.shape_cast %151 : vector<16xf32> to vector<16x1xf32>
    %153 = tpu.reciprocal %152 {approx = true} : vector<16x1xf32> -> vector<16x1xf32>
    %154 = vector.broadcast %153 : vector<16x1xf32> to vector<16x32xf32>
    %155 = arith.mulf %150, %154 : vector<16x32xf32>
    %156 = arith.truncf %155 : vector<16x32xf32> to vector<16x32xbf16>
    %cst_47 = arith.constant dense<0.000000e+00> : vector<16x128xf32>
    %157 = tpu.matmul %156, %144, %cst_47 {dimension_numbers = #tpu.dot_dimension_numbers<[1], [0], [0], [1], [0, 0, 1, 1], [], []>} : vector<16x32xbf16>, vector<32x128xbf16>, vector<16x128xf32> -> vector<16x128xf32>
    %158 = vector.extract_strided_slice %139 {offsets = [0, 128], sizes = [16, 128], strides = [1, 1]} : vector<16x256xbf16> to vector<16x128xbf16>
    %159 = vector.extract_strided_slice %140 {offsets = [0, 128], sizes = [32, 128], strides = [1, 1]} : vector<32x256xbf16> to vector<32x128xbf16>
    %160 = vector.extract_strided_slice %141 {offsets = [0, 128], sizes = [32, 128], strides = [1, 1]} : vector<32x256xbf16> to vector<32x128xbf16>
    %cst_48 = arith.constant dense<0.000000e+00> : vector<16x32xf32>
    %161 = tpu.matmul %158, %159, %cst_48 {dimension_numbers = #tpu.dot_dimension_numbers<[1], [1], [0], [0], [0, 0, 1, 0], [], []>} : vector<16x128xbf16>, vector<32x128xbf16>, vector<16x32xf32> -> vector<16x32xf32>
    %cst_49 = arith.constant dense<0xFF800000> : vector<16xf32>
    %162 = vector.multi_reduction <maximumf>, %161, %cst_49 [1] : vector<16x32xf32> to vector<16xf32>
    %163 = vector.shape_cast %162 : vector<16xf32> to vector<16x1xf32>
    %164 = vector.broadcast %163 : vector<16x1xf32> to vector<16x32xf32>
    %165 = arith.subf %161, %164 : vector<16x32xf32>
    %166 = math.exp %165 : vector<16x32xf32>
    %cst_50 = arith.constant dense<0.000000e+00> : vector<16xf32>
    %167 = vector.multi_reduction <add>, %166, %cst_50 [1] : vector<16x32xf32> to vector<16xf32>
    %168 = vector.shape_cast %167 : vector<16xf32> to vector<16x1xf32>
    %169 = tpu.reciprocal %168 {approx = true} : vector<16x1xf32> -> vector<16x1xf32>
    %170 = vector.broadcast %169 : vector<16x1xf32> to vector<16x32xf32>
    %171 = arith.mulf %166, %170 : vector<16x32xf32>
    %172 = arith.truncf %171 : vector<16x32xf32> to vector<16x32xbf16>
    %cst_51 = arith.constant dense<0.000000e+00> : vector<16x128xf32>
    %173 = tpu.matmul %172, %160, %cst_51 {dimension_numbers = #tpu.dot_dimension_numbers<[1], [0], [0], [1], [0, 0, 1, 1], [], []>} : vector<16x32xbf16>, vector<32x128xbf16>, vector<16x128xf32> -> vector<16x128xf32>
    %174 = tpu.concatenate %157, %173 in 1 : vector<16x128xf32>, vector<16x128xf32> -> vector<16x256xf32>
    %175 = tpu.concatenate %66, %102, %138, %174 in 0 : vector<16x256xf32>, vector<16x256xf32>, vector<16x256xf32>, vector<16x256xf32> -> vector<64x256xf32>
    %176 = arith.truncf %175 : vector<64x256xf32> to vector<64x256xbf16>
    %c0_52 = arith.constant 0 : index
    %c0_53 = arith.constant 0 : index
    %177 = vector.load %arg6[%c0_52, %c0_53] : memref<256x128xbf16, #tpu.memory_space<vmem>>, vector<256x128xbf16>
    %cst_54 = arith.constant dense<0.000000e+00> : vector<64x128xf32>
    %178 = tpu.matmul %176, %177, %cst_54 {dimension_numbers = #tpu.dot_dimension_numbers<[1], [0], [0], [1], [0, 0, 1, 1], [], []>} : vector<64x256xbf16>, vector<256x128xbf16>, vector<64x128xf32> -> vector<64x128xf32>
    %179 = vector.broadcast %18 : vector<1x128xf32> to vector<64x128xf32>
    %180 = arith.addf %178, %179 : vector<64x128xf32>
    %c0_55 = arith.constant 0 : index
    %c0_56 = arith.constant 0 : index
    %181 = vector.load %arg8[%c0_55, %c0_56] : memref<64x128xf32, #tpu.memory_space<vmem>>, vector<64x128xf32>
    tpu.vector_store %arg8[%c0_55, %c0_56], %180 {strides = array<i32>} : memref<64x128xf32, #tpu.memory_space<vmem>>, vector<64x128xf32>,
    return
  }
  func.func @transform_0(%arg0: i32) -> (i32, i32) {
    %c0_i32 = arith.constant 0 : i32
    %c0_i32_0 = arith.constant 0 : i32
    return %arg0, %c0_i32 : i32, i32
  }
  func.func @transform_1(%arg0: i32) -> (i32, i32) {
    %c0_i32 = arith.constant 0 : i32
    %c0_i32_0 = arith.constant 0 : i32
    return %arg0, %c0_i32 : i32, i32
  }
  func.func @transform_2(%arg0: i32) -> (i32, i32) {
    %c0_i32 = arith.constant 0 : i32
    %c0_i32_0 = arith.constant 0 : i32
    return %arg0, %c0_i32 : i32, i32
  }
  func.func @transform_3(%arg0: i32) -> (i32, i32) {
    %c0_i32 = arith.constant 0 : i32
    %c0_i32_0 = arith.constant 0 : i32
    return %arg0, %c0_i32 : i32, i32
  }
  func.func @transform_4(%arg0: i32) -> (i32, i32) {
    %c0_i32 = arith.constant 0 : i32
    %c0_i32_0 = arith.constant 0 : i32
    %c0_i32_1 = arith.constant 0 : i32
    return %c0_i32, %c0_i32_0 : i32, i32
  }
  func.func @transform_5(%arg0: i32) -> (i32, i32) {
    %c0_i32 = arith.constant 0 : i32
    %c0_i32_0 = arith.constant 0 : i32
    %c0_i32_1 = arith.constant 0 : i32
    return %c0_i32, %c0_i32_0 : i32, i32
  }
  func.func @transform_6(%arg0: i32) -> (i32, i32) {
    %c0_i32 = arith.constant 0 : i32
    %c0_i32_0 = arith.constant 0 : i32
    %c0_i32_1 = arith.constant 0 : i32
    return %c0_i32, %c0_i32_0 : i32, i32
  }
  func.func @transform_7(%arg0: i32) -> (i32, i32) {
    %c0_i32 = arith.constant 0 : i32
    %c0_i32_0 = arith.constant 0 : i32
    return %arg0, %c0_i32 : i32, i32
  }
}

</mosaic_0001>

<llo_original>
// kernel: tpu_custom_call.1
$region0: #{tpu_custom_call.1}
  #allocation0 [shape = 'u32[]', space=smem, size = 0x4, offset = 0x4, fixed_abs, tag = 'smem constant byte address 0x4 - core index']
  #allocation1 [shape = 'u32[144,128]{1,0:T(1,128)}', space=vmem, size = 0x12000, scoped, tag = 'internal scratch']
  %s0 = inlined_call_operand.hbm [shape: f32[128,128], index: 0, kind: input, shape index: {}]
  %s1 = inlined_call_operand.hbm [shape: f32[128,128], index: 1, kind: input, shape index: {}]
  %s2 = inlined_call_operand.hbm [shape: f32[256,128], index: 2, kind: input, shape index: {}]
  %s3 = inlined_call_operand.hbm [shape: f32[256,128], index: 3, kind: input, shape index: {}]
  %s4 = inlined_call_operand.hbm [shape: bf16[640,256], index: 4, kind: input, shape index: {}]
  %s5 = inlined_call_operand.hbm [shape: bf16[256,128], index: 5, kind: input, shape index: {}]
  %s6 = inlined_call_operand.vmem [shape: f32[8,256], index: 6, kind: input, shape index: {}]
  %s7 = inlined_call_operand.hbm [shape: f32[128,128], index: 7, kind: output, shape index: {}]
  %s8 = sld [smem:[#allocation0]]
  $region85: #{tpu_custom_call.1} parent=0
    _
  %s10 = ssub.s32 1, %s8
  %s11 = scalar_select 0, %s10, %s8
  $region1: #{tpu_custom_call.1} parent=0
    #allocation2 [shape = 'u8[65536]{0}', space=vmem, size = 0x10000, scoped, tag = 'input window, operand 0']
    #allocation3 [shape = 's32[2]{0}', space=sflag, size = 0x8, scoped, tag = 'scoped memory for tpu_custom_call.1']
    #allocation4 [shape = 's32[2]{0}', space=sflag, size = 0x8, scoped, tag = 'scoped memory for tpu_custom_call.1']
    #allocation5 [shape = 'u8[65536]{0}', space=vmem, size = 0x10000, scoped, tag = 'input window, operand 1']
    #allocation6 [shape = 's32[2]{0}', space=sflag, size = 0x8, scoped, tag = 'scoped memory for tpu_custom_call.1']
    #allocation7 [shape = 'u8[131072]{0}', space=vmem, size = 0x20000, scoped, tag = 'input window, operand 2']
    #allocation8 [shape = 'u8[131072]{0}', space=vmem, size = 0x20000, scoped, tag = 'input window, operand 3']
    #allocation9 [shape = 's32[2]{0}', space=sflag, size = 0x8, scoped, tag = 'scoped memory for tpu_custom_call.1']
    #allocation10 [shape = 'u8[327680]{0}', space=vmem, size = 0x50000, scoped, tag = 'input window, operand 4, single buffered']
    #allocation11 [shape = 'u8[65536]{0}', space=vmem, size = 0x10000, scoped, tag = 'input window, operand 5, single buffered']
    #allocation12 [shape = 's32[1]{0}', space=sflag, size = 0x4, scoped, tag = 'scoped memory for tpu_custom_call.1']
    #allocation13 [shape = 'u8[65536]{0}', space=vmem, size = 0x10000, scoped, tag = 'output window, operand 0']
    %12 = vsyncpa [#allocation3], 0
    %s13 = scalar_lea.sflag [#allocation3], 1
    %14 = vsyncpa %s13, 0
    %15 = vsyncpa [#allocation6], 0
    %s16 = scalar_lea.sflag [#allocation6], 1
    %17 = vsyncpa %s16, 0
    %18 = vsyncpa [#allocation9], 0
    %s19 = scalar_lea.sflag [#allocation9], 1
    %20 = vsyncpa %s19, 0
    %21 = vsyncpa [#allocation12], 0
    %22 = vsyncpa [#allocation4], 0
    %s23 = scalar_lea.sflag [#allocation4], 1
    %24 = vsyncpa %s23, 0
    loop: start=0, step=1, limit=4
    $region2: #{tpu_custom_call.1} parent=1 // loop_pre_header
      _
    $region3: #{tpu_custom_call.1} parent=1 // loop_header
      %s26 = sphi 0, %s30
      %p27 = scmp.ge.s32.totalorder %s26, 4
      %s36 = sphi 0, %s38
      %s39 = sphi 0, %s36
      %s40 = sphi 0, %s39
      %s56 = sphi 0, %s40
      %s62 = sphi 0, %s64
      %s65 = sphi 0, %s62
      %s66 = sphi 0, %s65
      %s82 = sphi 0, %s66
      %s88 = sphi 0, %s90
      %s91 = sphi 0, %s88
      %s92 = sphi 0, %s91
      %s108 = sphi 0, %s92
      %s114 = sphi 0, %s116
      %s117 = sphi 0, %s114
      %s118 = sphi 0, %s117
      %s134 = sphi 0, %s118
      %s138 = sphi 0, %s138
      %s140 = sphi 0, %s138
      %s141 = sphi 0, %s140
      %s155 = sphi 0, %s141
      %s159 = sphi 0, %s159
      %s161 = sphi 0, %s159
      %s162 = sphi 0, %s161
      %s176 = sphi 0, %s162
      %s180 = sphi 0, %s180
      %s182 = sphi 0, %s180
      %s183 = sphi 0, %s182
      %s197 = sphi 0, %s183
      %s203 = sphi 0, %s205
      %s206 = sphi 0, %s203
      %s207 = sphi 0, %s206
      %s223 = sphi 0, %s207
    $region4: #{tpu_custom_call.1} parent=1 // loop_header_branch
      %29 = sbr.rel (%p27) target = $region8
    $region5: #{tpu_custom_call.1} parent=1 // loop_body
      %s31 = ssub.s32 %s26, 1
      %s32 = ssub.s32 %s26, 2
      %s33 = sadd.s32 %s26, 1
      %s34 = ssub.s32 %s26, %s33
      %p35 = scmp.eq.s32.totalorder %s34, 0
      %s37 = sadd.s32 %s36, 1
      %s38 = scalar_select %p35, %s36, %s37
      %p41 = pneg %p35
      %p42 = scmp.eq.s32.totalorder %s26, 1
      %p43 = por %p41, %p42
      %p44 = scmp.ne.s32.totalorder %s36, %s39
      %p45 = scmp.eq.s32.totalorder %s26, 0
      %p46 = por %p44, %p45
      %p47 = scmp.ne.s32.totalorder %s36, %s39
      %p48 = scmp.eq.s32.totalorder %s31, 1
      %p49 = por %p47, %p48
      %p50 = scmp.ne.s32.totalorder %s39, %s40
      %p51 = scmp.eq.s32.totalorder %s31, 0
      %p52 = por %p50, %p51
      %p53 = scmp.ne.s32.totalorder %s39, %s40
      %p54 = scmp.eq.s32.totalorder %s32, 1
      %p55 = por %p53, %p54
      %p57 = scmp.ne.s32.totalorder %s40, %s56
      %p58 = scmp.eq.s32.totalorder %s32, 0
      %p59 = por %p57, %p58
      %s60 = ssub.s32 %s26, %s33
      %p61 = scmp.eq.s32.totalorder %s60, 0
      %s63 = sadd.s32 %s62, 1
      %s64 = scalar_select %p61, %s62, %s63
      %p67 = pneg %p61
      %p68 = scmp.eq.s32.totalorder %s26, 1
      %p69 = por %p67, %p68
      %p70 = scmp.ne.s32.totalorder %s62, %s65
      %p71 = scmp.eq.s32.totalorder %s26, 0
      %p72 = por %p70, %p71
      %p73 = scmp.ne.s32.totalorder %s62, %s65
      %p74 = scmp.eq.s32.totalorder %s31, 1
      %p75 = por %p73, %p74
      %p76 = scmp.ne.s32.totalorder %s65, %s66
      %p77 = scmp.eq.s32.totalorder %s31, 0
      %p78 = por %p76, %p77
      %p79 = scmp.ne.s32.totalorder %s65, %s66
      %p80 = scmp.eq.s32.totalorder %s32, 1
      %p81 = por %p79, %p80
      %p83 = scmp.ne.s32.totalorder %s66, %s82
      %p84 = scmp.eq.s32.totalorder %s32, 0
      %p85 = por %p83, %p84
      %s86 = ssub.s32 %s26, %s33
      %p87 = scmp.eq.s32.totalorder %s86, 0
      %s89 = sadd.s32 %s88, 1
      %s90 = scalar_select %p87, %s88, %s89
      %p93 = pneg %p87
      %p94 = scmp.eq.s32.totalorder %s26, 1
      %p95 = por %p93, %p94
      %p96 = scmp.ne.s32.totalorder %s88, %s91
      %p97 = scmp.eq.s32.totalorder %s26, 0
      %p98 = por %p96, %p97
      %p99 = scmp.ne.s32.totalorder %s88, %s91
      %p100 = scmp.eq.s32.totalorder %s31, 1
      %p101 = por %p99, %p100
      %p102 = scmp.ne.s32.totalorder %s91, %s92
      %p103 = scmp.eq.s32.totalorder %s31, 0
      %p104 = por %p102, %p103
      %p105 = scmp.ne.s32.totalorder %s91, %s92
      %p106 = scmp.eq.s32.totalorder %s32, 1
      %p107 = por %p105, %p106
      %p109 = scmp.ne.s32.totalorder %s92, %s108
      %p110 = scmp.eq.s32.totalorder %s32, 0
      %p111 = por %p109, %p110
      %s112 = ssub.s32 %s26, %s33
      %p113 = scmp.eq.s32.totalorder %s112, 0
      %s115 = sadd.s32 %s114, 1
      %s116 = scalar_select %p113, %s114, %s115
      %p119 = pneg %p113
      %p120 = scmp.eq.s32.totalorder %s26, 1
      %p121 = por %p119, %p120
      %p122 = scmp.ne.s32.totalorder %s114, %s117
      %p123 = scmp.eq.s32.totalorder %s26, 0
      %p124 = por %p122, %p123
      %p125 = scmp.ne.s32.totalorder %s114, %s117
      %p126 = scmp.eq.s32.totalorder %s31, 1
      %p127 = por %p125, %p126
      %p128 = scmp.ne.s32.totalorder %s117, %s118
      %p129 = scmp.eq.s32.totalorder %s31, 0
      %p130 = por %p128, %p129
      %p131 = scmp.ne.s32.totalorder %s117, %s118
      %p132 = scmp.eq.s32.totalorder %s32, 1
      %p133 = por %p131, %p132
      %p135 = scmp.ne.s32.totalorder %s118, %s134
      %p136 = scmp.eq.s32.totalorder %s32, 0
      %p137 = por %p135, %p136
      %s139 = sadd.s32 %s138, 1
      %p142 = scmp.eq.s32.totalorder %s26, 1
      %p143 = scmp.ne.s32.totalorder %s138, %s140
      %p144 = scmp.eq.s32.totalorder %s26, 0
      %p145 = por %p143, %p144
      %p146 = scmp.ne.s32.totalorder %s138, %s140
      %p147 = scmp.eq.s32.totalorder %s31, 1
      %p148 = por %p146, %p147
      %p149 = scmp.ne.s32.totalorder %s140, %s141
      %p150 = scmp.eq.s32.totalorder %s31, 0
      %p151 = por %p149, %p150
      %p152 = scmp.ne.s32.totalorder %s140, %s141
      %p153 = scmp.eq.s32.totalorder %s32, 1
      %p154 = por %p152, %p153
      %p156 = scmp.ne.s32.totalorder %s141, %s155
      %p157 = scmp.eq.s32.totalorder %s32, 0
      %p158 = por %p156, %p157
      %s160 = sadd.s32 %s159, 1
      %p163 = scmp.eq.s32.totalorder %s26, 1
      %p164 = scmp.ne.s32.totalorder %s159, %s161
      %p165 = scmp.eq.s32.totalorder %s26, 0
      %p166 = por %p164, %p165
      %p167 = scmp.ne.s32.totalorder %s159, %s161
      %p168 = scmp.eq.s32.totalorder %s31, 1
      %p169 = por %p167, %p168
      %p170 = scmp.ne.s32.totalorder %s161, %s162
      %p171 = scmp.eq.s32.totalorder %s31, 0
      %p172 = por %p170, %p171
      %p173 = scmp.ne.s32.totalorder %s161, %s162
      %p174 = scmp.eq.s32.totalorder %s32, 1
      %p175 = por %p173, %p174
      %p177 = scmp.ne.s32.totalorder %s162, %s176
      %p178 = scmp.eq.s32.totalorder %s32, 0
      %p179 = por %p177, %p178
      %s181 = sadd.s32 %s180, 1
      %p184 = scmp.eq.s32.totalorder %s26, 1
      %p185 = scmp.ne.s32.totalorder %s180, %s182
      %p186 = scmp.eq.s32.totalorder %s26, 0
      %p187 = por %p185, %p186
      %p188 = scmp.ne.s32.totalorder %s180, %s182
      %p189 = scmp.eq.s32.totalorder %s31, 1
      %p190 = por %p188, %p189
      %p191 = scmp.ne.s32.totalorder %s182, %s183
      %p192 = scmp.eq.s32.totalorder %s31, 0
      %p193 = por %p191, %p192
      %p194 = scmp.ne.s32.totalorder %s182, %s183
      %p195 = scmp.eq.s32.totalorder %s32, 1
      %p196 = por %p194, %p195
      %p198 = scmp.ne.s32.totalorder %s183, %s197
      %p199 = scmp.eq.s32.totalorder %s32, 0
      %p200 = por %p198, %p199
      %s201 = ssub.s32 %s26, %s33
      %p202 = scmp.eq.s32.totalorder %s201, 0
      %s204 = sadd.s32 %s203, 1
      %s205 = scalar_select %p202, %s203, %s204
      %p208 = pneg %p202
      %p209 = scmp.eq.s32.totalorder %s26, 1
      %p210 = por %p208, %p209
      %p211 = scmp.ne.s32.totalorder %s203, %s206
      %p212 = scmp.eq.s32.totalorder %s26, 0
      %p213 = por %p211, %p212
      %p214 = scmp.ne.s32.totalorder %s203, %s206
      %p215 = scmp.eq.s32.totalorder %s31, 1
      %p216 = por %p214, %p215
      %p217 = scmp.ne.s32.totalorder %s206, %s207
      %p218 = scmp.eq.s32.totalorder %s31, 0
      %p219 = por %p217, %p218
      %p220 = scmp.ne.s32.totalorder %s206, %s207
      %p221 = scmp.eq.s32.totalorder %s32, 1
      %p222 = por %p220, %p221
      %p224 = scmp.ne.s32.totalorder %s207, %s223
      %p225 = scmp.eq.s32.totalorder %s32, 0
      %p226 = por %p224, %p225
      %p227 = scmp.le.s32.totalorder 1, %s26
      %p228 = scmp.lt.s32.totalorder %s26, 3
      %p229 = pnand %p227, %p228
      %p230 = pneg %p229
      // Predicated region
      $region9: #{tpu_custom_call.1} parent=5 // pred_check
        _
      $region10: #{tpu_custom_call.1} parent=5 // pred_check_branch
        %232 = sbr.rel (%p229) target = $region12
      $region11: #{tpu_custom_call.1} parent=5 // pred_region
        %s233 = ssub.s32 %s26, 1
        // Predicated region
        $region13: #{tpu_custom_call.1} parent=11 // pred_check
          %p234 = pneg %p151
        $region14: #{tpu_custom_call.1} parent=11 // pred_check_branch
          %236 = sbr.rel (%p234) target = $region16
        $region15: #{tpu_custom_call.1} parent=11 // pred_region
          %s238 = ssub.s32 10240, 10240
          %239 = vsyncadd [#allocation9], %s238
          %s240 = sshll.u32 [#allocation10], 4
          %s241 = int_to_ptr.vmem [resolvable:$true] %s240
          %246 = dma.hbm_to_vmem [thread:$0]  %s4, 10240, %s241, [#allocation9], 128, 128, 8
        $region16: #{tpu_custom_call.1} parent=11 // pred_fallthru
          _
        // Predicated region
        $region17: #{tpu_custom_call.1} parent=11 // pred_check
          %p247 = pneg %p172
        $region18: #{tpu_custom_call.1} parent=11 // pred_check_branch
          %249 = sbr.rel (%p247) target = $region20
        $region19: #{tpu_custom_call.1} parent=11 // pred_region
          %s251 = ssub.s32 2048, 2048
          %252 = vsyncadd [#allocation12], %s251
          %s253 = sshll.u32 [#allocation11], 4
          %s254 = int_to_ptr.vmem [resolvable:$true] %s253
          %259 = dma.hbm_to_vmem [thread:$0]  %s5, 2048, %s254, [#allocation12], 64, 64, 4
        $region20: #{tpu_custom_call.1} parent=11 // pred_fallthru
          _
        // Predicated region
        $region21: #{tpu_custom_call.1} parent=11 // pred_check
          %p260 = pneg %p193
        $region22: #{tpu_custom_call.1} parent=11 // pred_check_branch
          %262 = sbr.rel (%p260) target = $region24
        $region23: #{tpu_custom_call.1} parent=11 // pred_region
          _
        $region24: #{tpu_custom_call.1} parent=11 // pred_fallthru
          _
      $region12: #{tpu_custom_call.1} parent=5 // pred_fallthru
        _
      %p263 = scmp.lt.s32.totalorder %s26, 2
      // Predicated region
      $region25: #{tpu_custom_call.1} parent=5 // pred_check
        %p264 = pneg %p263
      $region26: #{tpu_custom_call.1} parent=5 // pred_check_branch
        %266 = sbr.rel (%p264) target = $region28
      $region27: #{tpu_custom_call.1} parent=5 // pred_region
        // Predicated region
        $region29: #{tpu_custom_call.1} parent=27 // pred_check
          %p267 = pneg %p46
        $region30: #{tpu_custom_call.1} parent=27 // pred_check_branch
          %269 = sbr.rel (%p267) target = $region32
        $region31: #{tpu_custom_call.1} parent=27 // pred_region
          %s270 = sand.u32 %s36, 1
          %s271 = scalar_lea.sflag [#allocation3], %s270
          %s272 = sand.u32 %s36, 1
          %s273 = smul.addr %s272, 64
          %s274 = scalar_lea.vmem [#allocation2], %s273
          %s275 = smul.u32 8, %s26
          %s277 = ssub.s32 1024, 1024
          %278 = vsyncadd %s271, %s277
          %s279 = smul.addr %s275, 128
          %s280 = scalar_lea.hbm %s0, %s279
          %s281 = sshll.u32 %s274, 4
          %s282 = int_to_ptr.vmem [resolvable:$true] %s281
          %287 = dma.hbm_to_vmem [thread:$0]  %s280, 1024, %s282, %s271, 128, 128, 8
        $region32: #{tpu_custom_call.1} parent=27 // pred_fallthru
          _
        // Predicated region
        $region33: #{tpu_custom_call.1} parent=27 // pred_check
          %p288 = pneg %p72
        $region34: #{tpu_custom_call.1} parent=27 // pred_check_branch
          %290 = sbr.rel (%p288) target = $region36
        $region35: #{tpu_custom_call.1} parent=27 // pred_region
          %s291 = sand.u32 %s26, 1
          %s292 = scalar_lea.sflag [#allocation6], %s291
          %s293 = sand.u32 %s62, 1
          %s294 = smul.addr %s293, 64
          %s295 = scalar_lea.vmem [#allocation5], %s294
          %s296 = smul.u32 8, %s26
          %s298 = ssub.s32 1024, 1024
          %299 = vsyncadd %s292, %s298
          %s300 = smul.addr %s296, 128
          %s301 = scalar_lea.hbm %s1, %s300
          %s302 = sshll.u32 %s295, 4
          %s303 = int_to_ptr.vmem [resolvable:$true] %s302
          %308 = dma.hbm_to_vmem [thread:$0]  %s301, 1024, %s303, %s292, 128, 128, 8
        $region36: #{tpu_custom_call.1} parent=27 // pred_fallthru
          _
        // Predicated region
        $region37: #{tpu_custom_call.1} parent=27 // pred_check
          %p309 = pneg %p98
        $region38: #{tpu_custom_call.1} parent=27 // pred_check_branch
          %311 = sbr.rel (%p309) target = $region40
        $region39: #{tpu_custom_call.1} parent=27 // pred_region
          %s312 = sand.u32 %s26, 1
          %s313 = scalar_lea.sflag [#allocation6], %s312
          %s314 = sand.u32 %s88, 1
          %s315 = smul.addr %s314, 128
          %s316 = scalar_lea.vmem [#allocation7], %s315
          %s317 = smul.u32 16, %s26
          %s319 = ssub.s32 2048, 2048
          %320 = vsyncadd %s313, %s319
          %s321 = smul.addr %s317, 128
          %s322 = scalar_lea.hbm %s2, %s321
          %s323 = sshll.u32 %s316, 4
          %s324 = int_to_ptr.vmem [resolvable:$true] %s323
          %329 = dma.hbm_to_vmem [thread:$0]  %s322, 2048, %s324, %s313, 128, 128, 8
        $region40: #{tpu_custom_call.1} parent=27 // pred_fallthru
          _
        // Predicated region
        $region41: #{tpu_custom_call.1} parent=27 // pred_check
          %p330 = pneg %p124
        $region42: #{tpu_custom_call.1} parent=27 // pred_check_branch
          %332 = sbr.rel (%p330) target = $region44
        $region43: #{tpu_custom_call.1} parent=27 // pred_region
          %s333 = sand.u32 %s26, 1
          %s334 = scalar_lea.sflag [#allocation9], %s333
          %s335 = sand.u32 %s114, 1
          %s336 = smul.addr %s335, 128
          %s337 = scalar_lea.vmem [#allocation8], %s336
          %s338 = smul.u32 16, %s26
          %s340 = ssub.s32 2048, 2048
          %341 = vsyncadd %s334, %s340
          %s342 = smul.addr %s338, 128
          %s343 = scalar_lea.hbm %s3, %s342
          %s344 = sshll.u32 %s337, 4
          %s345 = int_to_ptr.vmem [resolvable:$true] %s344
          %350 = dma.hbm_to_vmem [thread:$0]  %s343, 2048, %s345, %s334, 128, 128, 8
        $region44: #{tpu_custom_call.1} parent=27 // pred_fallthru
          _
      $region28: #{tpu_custom_call.1} parent=5 // pred_fallthru
        _
      %p351 = scmp.le.s32.totalorder 1, %s26
      %p352 = scmp.lt.s32.totalorder %s26, 3
      %p353 = pnand %p351, %p352
      %p354 = pneg %p353
      // Predicated region
      $region45: #{tpu_custom_call.1} parent=5 // pred_check
        _
      $region46: #{tpu_custom_call.1} parent=5 // pred_check_branch
        %356 = sbr.rel (%p353) target = $region48
      $region47: #{tpu_custom_call.1} parent=5 // pred_region
        %s357 = ssub.s32 %s26, 1
        %s358 = sand.u32 %s39, 1
        %s359 = scalar_lea.sflag [#allocation3], %s358
        %s360 = sand.u32 %s39, 1
        %s361 = smul.addr %s360, 64
        %s362 = scalar_lea.vmem [#allocation2], %s361
        // Predicated region
        $region49: #{tpu_custom_call.1} parent=47 // pred_check
          %p363 = pneg %p52
        $region50: #{tpu_custom_call.1} parent=47 // pred_check_branch
          %365 = sbr.rel (%p363) target = $region52
        $region51: #{tpu_custom_call.1} parent=47 // pred_region
          %366 = dma.done %s359, 1024
        $region52: #{tpu_custom_call.1} parent=47 // pred_fallthru
          _
        %s367 = sand.u32 %s31, 1
        %s368 = scalar_lea.sflag [#allocation6], %s367
        %s369 = sand.u32 %s65, 1
        %s370 = smul.addr %s369, 64
        %s371 = scalar_lea.vmem [#allocation5], %s370
        // Predicated region
        $region53: #{tpu_custom_call.1} parent=47 // pred_check
          %p372 = pneg %p78
        $region54: #{tpu_custom_call.1} parent=47 // pred_check_branch
          %374 = sbr.rel (%p372) target = $region56
        $region55: #{tpu_custom_call.1} parent=47 // pred_region
          %375 = dma.done %s368, 1024
        $region56: #{tpu_custom_call.1} parent=47 // pred_fallthru
          _
        %s376 = sand.u32 %s31, 1
        %s377 = scalar_lea.sflag [#allocation6], %s376
        %s378 = sand.u32 %s91, 1
        %s379 = smul.addr %s378, 128
        %s380 = scalar_lea.vmem [#allocation7], %s379
        // Predicated region
        $region57: #{tpu_custom_call.1} parent=47 // pred_check
          %p381 = pneg %p104
        $region58: #{tpu_custom_call.1} parent=47 // pred_check_branch
          %383 = sbr.rel (%p381) target = $region60
        $region59: #{tpu_custom_call.1} parent=47 // pred_region
          %384 = dma.done %s377, 2048
        $region60: #{tpu_custom_call.1} parent=47 // pred_fallthru
          _
        %s385 = sand.u32 %s31, 1
        %s386 = scalar_lea.sflag [#allocation9], %s385
        %s387 = sand.u32 %s117, 1
        %s388 = smul.addr %s387, 128
        %s389 = scalar_lea.vmem [#allocation8], %s388
        // Predicated region
        $region61: #{tpu_custom_call.1} parent=47 // pred_check
          %p390 = pneg %p130
        $region62: #{tpu_custom_call.1} parent=47 // pred_check_branch
          %392 = sbr.rel (%p390) target = $region64
        $region63: #{tpu_custom_call.1} parent=47 // pred_region
          %393 = dma.done %s386, 2048
        $region64: #{tpu_custom_call.1} parent=47 // pred_fallthru
          _
        // Predicated region
        $region65: #{tpu_custom_call.1} parent=47 // pred_check
          %p394 = pneg %p151
        $region66: #{tpu_custom_call.1} parent=47 // pred_check_branch
          %396 = sbr.rel (%p394) target = $region68
        $region67: #{tpu_custom_call.1} parent=47 // pred_region
          %397 = dma.done [#allocation9], 10240
        $region68: #{tpu_custom_call.1} parent=47 // pred_fallthru
          _
        // Predicated region
        $region69: #{tpu_custom_call.1} parent=47 // pred_check
          %p398 = pneg %p172
        $region70: #{tpu_custom_call.1} parent=47 // pred_check_branch
          %400 = sbr.rel (%p398) target = $region72
        $region71: #{tpu_custom_call.1} parent=47 // pred_region
          %401 = dma.done [#allocation12], 2048
        $region72: #{tpu_custom_call.1} parent=47 // pred_fallthru
          _
        %s402 = sand.u32 %s39, 1
        %s403 = scalar_lea.sflag [#allocation3], %s402
        %s404 = sand.u32 %s39, 1
        %s405 = smul.addr %s404, 64
        %s406 = scalar_lea.vmem [#allocation2], %s405
        %p407 = pneg %p52
        %p408 = pneg %p49
        %s409 = sand.u32 %s31, 1
        %s410 = scalar_lea.sflag [#allocation6], %s409
        %s411 = sand.u32 %s65, 1
        %s412 = smul.addr %s411, 64
        %s413 = scalar_lea.vmem [#allocation5], %s412
        %p414 = pneg %p78
        %p415 = pneg %p75
        %s416 = sand.u32 %s31, 1
        %s417 = scalar_lea.sflag [#allocation6], %s416
        %s418 = sand.u32 %s91, 1
        %s419 = smul.addr %s418, 128
        %s420 = scalar_lea.vmem [#allocation7], %s419
        %p421 = pneg %p104
        %p422 = pneg %p101
        %s423 = sand.u32 %s31, 1
        %s424 = scalar_lea.sflag [#allocation9], %s423
        %s425 = sand.u32 %s117, 1
        %s426 = smul.addr %s425, 128
        %s427 = scalar_lea.vmem [#allocation8], %s426
        %p428 = pneg %p130
        %p429 = pneg %p127
        %p430 = pneg %p151
        %p431 = pneg %p148
        %p432 = pneg %p172
        %p433 = pneg %p169
        %p434 = pneg %p193
        %p435 = pneg %p190
        %p436 = pneg %p219
        %p437 = pneg %p216
        %s438 = sand.u32 %s206, 1
        %s439 = scalar_lea.sflag [#allocation4], %s438
        %s440 = sand.u32 %s206, 1
        %s441 = smul.addr %s440, 64
        %s442 = scalar_lea.vmem [#allocation13], %s441
        %s443 = smul.u32 8, %s31
        %s444 = smul.u32 8, %s31
        %s445 = smul.u32 16, %s31
        %s446 = smul.u32 16, %s31
        %s447 = smul.u32 8, %s31
        %v449 = vld [vmem:[%s362] sm:$0xff]
        %v450 = vld [vmem:[%s362 + $0x8] sm:$0xff]
        %v451 = vld [vmem:[%s362 + $0x10] sm:$0xff]
        %v452 = vld [vmem:[%s362 + $0x18] sm:$0xff]
        %v453 = vld [vmem:[%s362 + $0x20] sm:$0xff]
        %v454 = vld [vmem:[%s362 + $0x28] sm:$0xff]
        %v455 = vld [vmem:[%s362 + $0x30] sm:$0xff]
        %v456 = vld [vmem:[%s362 + $0x38] sm:$0xff]
        %v457 = vpack.c.bf16 %v450, %v449
        %v458 = vpack.c.bf16 %v452, %v451
        %v459 = vpack.c.bf16 %v454, %v453
        %v460 = vpack.c.bf16 %v456, %v455
        %v461 = vld [vmem:[%s371] sm:$0xff]
        %v462 = vld [vmem:[%s371 + $0x8] sm:$0xff]
        %v463 = vld [vmem:[%s371 + $0x10] sm:$0xff]
        %v464 = vld [vmem:[%s371 + $0x18] sm:$0xff]
        %v465 = vld [vmem:[%s371 + $0x20] sm:$0xff]
        %v466 = vld [vmem:[%s371 + $0x28] sm:$0xff]
        %v467 = vld [vmem:[%s371 + $0x30] sm:$0xff]
        %v468 = vld [vmem:[%s371 + $0x38] sm:$0xff]
        %v469 = vpack.c.bf16 %v462, %v461
        %v470 = vpack.c.bf16 %v464, %v463
        %v471 = vpack.c.bf16 %v466, %v465
        %v472 = vpack.c.bf16 %v468, %v467
        %v473 = vld [vmem:[%s380] sm:$0xff]
        %v474 = vld [vmem:[%s380 + $0x8] sm:$0xff]
        %v475 = vld [vmem:[%s380 + $0x10] sm:$0xff]
        %v476 = vld [vmem:[%s380 + $0x18] sm:$0xff]
        %v477 = vld [vmem:[%s380 + $0x20] sm:$0xff]
        %v478 = vld [vmem:[%s380 + $0x28] sm:$0xff]
        %v479 = vld [vmem:[%s380 + $0x30] sm:$0xff]
        %v480 = vld [vmem:[%s380 + $0x38] sm:$0xff]
        %v481 = vld [vmem:[%s380 + $0x40] sm:$0xff]
        %v482 = vld [vmem:[%s380 + $0x48] sm:$0xff]
        %v483 = vld [vmem:[%s380 + $0x50] sm:$0xff]
        %v484 = vld [vmem:[%s380 + $0x58] sm:$0xff]
        %v485 = vld [vmem:[%s380 + $0x60] sm:$0xff]
        %v486 = vld [vmem:[%s380 + $0x68] sm:$0xff]
        %v487 = vld [vmem:[%s380 + $0x70] sm:$0xff]
        %v488 = vld [vmem:[%s380 + $0x78] sm:$0xff]
        %v489 = vpack.c.bf16 %v474, %v473
        %v490 = vpack.c.bf16 %v476, %v475
        %v491 = vpack.c.bf16 %v478, %v477
        %v492 = vpack.c.bf16 %v480, %v479
        %v493 = vpack.c.bf16 %v482, %v481
        %v494 = vpack.c.bf16 %v484, %v483
        %v495 = vpack.c.bf16 %v486, %v485
        %v496 = vpack.c.bf16 %v488, %v487
        %v497 = vld [vmem:[%s389] sm:$0xff]
        %v498 = vld [vmem:[%s389 + $0x8] sm:$0xff]
        %v499 = vld [vmem:[%s389 + $0x10] sm:$0xff]
        %v500 = vld [vmem:[%s389 + $0x18] sm:$0xff]
        %v501 = vld [vmem:[%s389 + $0x20] sm:$0xff]
        %v502 = vld [vmem:[%s389 + $0x28] sm:$0xff]
        %v503 = vld [vmem:[%s389 + $0x30] sm:$0xff]
        %v504 = vld [vmem:[%s389 + $0x38] sm:$0xff]
        %v505 = vld [vmem:[%s389 + $0x40] sm:$0xff]
        %v506 = vld [vmem:[%s389 + $0x48] sm:$0xff]
        %v507 = vld [vmem:[%s389 + $0x50] sm:$0xff]
        %v508 = vld [vmem:[%s389 + $0x58] sm:$0xff]
        %v509 = vld [vmem:[%s389 + $0x60] sm:$0xff]
        %v510 = vld [vmem:[%s389 + $0x68] sm:$0xff]
        %v511 = vld [vmem:[%s389 + $0x70] sm:$0xff]
        %v512 = vld [vmem:[%s389 + $0x78] sm:$0xff]
        %v513 = vpack.c.bf16 %v498, %v497
        %v514 = vpack.c.bf16 %v500, %v499
        %v515 = vpack.c.bf16 %v502, %v501
        %v516 = vpack.c.bf16 %v504, %v503
        %v517 = vpack.c.bf16 %v506, %v505
        %v518 = vpack.c.bf16 %v508, %v507
        %v519 = vpack.c.bf16 %v510, %v509
        %v520 = vpack.c.bf16 %v512, %v511
        %v521 = vld [vmem:[#allocation10] sm:$0xff]
        %v522 = vld [vmem:[#allocation10 + $0x8] sm:$0xff]
        %v523 = vld [vmem:[#allocation10 + $0x10] sm:$0xff]
        %v524 = vld [vmem:[#allocation10 + $0x18] sm:$0xff]
        %v525 = vld [vmem:[#allocation10 + $0x20] sm:$0xff]
        %v526 = vld [vmem:[#allocation10 + $0x28] sm:$0xff]
        %v527 = vld [vmem:[#allocation10 + $0x30] sm:$0xff]
        %v528 = vld [vmem:[#allocation10 + $0x38] sm:$0xff]
        %v529 = vld [vmem:[#allocation10 + $0x40] sm:$0xff]
        %v530 = vld [vmem:[#allocation10 + $0x48] sm:$0xff]
        %v531 = vld [vmem:[#allocation10 + $0x50] sm:$0xff]
        %v532 = vld [vmem:[#allocation10 + $0x58] sm:$0xff]
        %v533 = vld [vmem:[#allocation10 + $0x60] sm:$0xff]
        %v534 = vld [vmem:[#allocation10 + $0x68] sm:$0xff]
        %v535 = vld [vmem:[#allocation10 + $0x70] sm:$0xff]
        %v536 = vld [vmem:[#allocation10 + $0x78] sm:$0xff]
        %v537 = vld [vmem:[#allocation10 + $0x80] sm:$0xff]
        %v538 = vld [vmem:[#allocation10 + $0x88] sm:$0xff]
        %v539 = vld [vmem:[#allocation10 + $0x90] sm:$0xff]
        %v540 = vld [vmem:[#allocation10 + $0x98] sm:$0xff]
        %v541 = vld [vmem:[#allocation10 + $0xa0] sm:$0xff]
        %v542 = vld [vmem:[#allocation10 + $0xa8] sm:$0xff]
        %v543 = vld [vmem:[#allocation10 + $0xb0] sm:$0xff]
        %v544 = vld [vmem:[#allocation10 + $0xb8] sm:$0xff]
        %v545 = vld [vmem:[#allocation10 + $0xc0] sm:$0xff]
        %v546 = vld [vmem:[#allocation10 + $0xc8] sm:$0xff]
        %v547 = vld [vmem:[#allocation10 + $0xd0] sm:$0xff]
        %v548 = vld [vmem:[#allocation10 + $0xd8] sm:$0xff]
        %v549 = vld [vmem:[#allocation10 + $0xe0] sm:$0xff]
        %v550 = vld [vmem:[#allocation10 + $0xe8] sm:$0xff]
        %v551 = vld [vmem:[#allocation10 + $0xf0] sm:$0xff]
        %v552 = vld [vmem:[#allocation10 + $0xf8] sm:$0xff]
        %v553 = vld [vmem:[#allocation10 + $0x100] sm:$0xff]
        %v554 = vld [vmem:[#allocation10 + $0x108] sm:$0xff]
        %v555 = vld [vmem:[#allocation10 + $0x110] sm:$0xff]
        %v556 = vld [vmem:[#allocation10 + $0x118] sm:$0xff]
        %v557 = vld [vmem:[#allocation10 + $0x120] sm:$0xff]
        %v558 = vld [vmem:[#allocation10 + $0x128] sm:$0xff]
        %v559 = vld [vmem:[#allocation10 + $0x130] sm:$0xff]
        %v560 = vld [vmem:[#allocation10 + $0x138] sm:$0xff]
        %v561 = vld [vmem:[#allocation10 + $0x140] sm:$0xff]
        %v562 = vld [vmem:[#allocation10 + $0x148] sm:$0xff]
        %v563 = vld [vmem:[#allocation10 + $0x150] sm:$0xff]
        %v564 = vld [vmem:[#allocation10 + $0x158] sm:$0xff]
        %v565 = vld [vmem:[#allocation10 + $0x160] sm:$0xff]
        %v566 = vld [vmem:[#allocation10 + $0x168] sm:$0xff]
        %v567 = vld [vmem:[#allocation10 + $0x170] sm:$0xff]
        %v568 = vld [vmem:[#allocation10 + $0x178] sm:$0xff]
        %v569 = vld [vmem:[#allocation10 + $0x180] sm:$0xff]
        %v570 = vld [vmem:[#allocation10 + $0x188] sm:$0xff]
        %v571 = vld [vmem:[#allocation10 + $0x190] sm:$0xff]
        %v572 = vld [vmem:[#allocation10 + $0x198] sm:$0xff]
        %v573 = vld [vmem:[#allocation10 + $0x1a0] sm:$0xff]
        %v574 = vld [vmem:[#allocation10 + $0x1a8] sm:$0xff]
        %v575 = vld [vmem:[#allocation10 + $0x1b0] sm:$0xff]
        %v576 = vld [vmem:[#allocation10 + $0x1b8] sm:$0xff]
        %v577 = vld [vmem:[#allocation10 + $0x1c0] sm:$0xff]
        %v578 = vld [vmem:[#allocation10 + $0x1c8] sm:$0xff]
        %v579 = vld [vmem:[#allocation10 + $0x1d0] sm:$0xff]
        %v580 = vld [vmem:[#allocation10 + $0x1d8] sm:$0xff]
        %v581 = vld [vmem:[#allocation10 + $0x1e0] sm:$0xff]
        %v582 = vld [vmem:[#allocation10 + $0x1e8] sm:$0xff]
        %v583 = vld [vmem:[#allocation10 + $0x1f0] sm:$0xff]
        %v584 = vld [vmem:[#allocation10 + $0x1f8] sm:$0xff]
        %v585 = vld [vmem:[#allocation10 + $0x200] sm:$0xff]
        %v586 = vld [vmem:[#allocation10 + $0x208] sm:$0xff]
        %v587 = vld [vmem:[#allocation10 + $0x210] sm:$0xff]
        %v588 = vld [vmem:[#allocation10 + $0x218] sm:$0xff]
        %v589 = vld [vmem:[#allocation10 + $0x220] sm:$0xff]
        %v590 = vld [vmem:[#allocation10 + $0x228] sm:$0xff]
        %v591 = vld [vmem:[#allocation10 + $0x230] sm:$0xff]
        %v592 = vld [vmem:[#allocation10 + $0x238] sm:$0xff]
        %v593 = vld [vmem:[#allocation10 + $0x240] sm:$0xff]
        %v594 = vld [vmem:[#allocation10 + $0x248] sm:$0xff]
        %v595 = vld [vmem:[#allocation10 + $0x250] sm:$0xff]
        %v596 = vld [vmem:[#allocation10 + $0x258] sm:$0xff]
        %v597 = vld [vmem:[#allocation10 + $0x260] sm:$0xff]
        %v598 = vld [vmem:[#allocation10 + $0x268] sm:$0xff]
        %v599 = vld [vmem:[#allocation10 + $0x270] sm:$0xff]
        %v600 = vld [vmem:[#allocation10 + $0x278] sm:$0xff]
        %v601 = vld [vmem:[%s6] ss:$8 sm:$0x3]
        %s602 = scalar_lea.vmem %s6, 1
        %v603 = vld [vmem:[%s602] ss:$8 sm:$0x3]
        %s604 = scalar_lea.vmem %s6, 2
        %v605 = vld [vmem:[%s604] ss:$8 sm:$0x3]
        %v606 = vld [vmem:[%s6 + $0x3] ss:$0 sm:$0xff]
        %v608 = vlaneseq
        %v609 = vshrl.u32 %v608, 7
        %v610 = vsub.s32 0, %v609
        %v611 = vrot.slane %v601, %v610
        %v612 = vlaneseq
        %v613 = vshrl.u32 %v612, 7
        %v614 = vsub.s32 1, %v613
        %v615 = vrot.slane %v601, %v614
        %v650 = vunpack.c.l.b16 %v521
        %v651 = vunpack.c.h.b16 %v521
        %v652 = vunpack.c.l.b16 %v522
        %v653 = vunpack.c.h.b16 %v522
        %v654 = vunpack.c.l.b16 %v523
        %v655 = vunpack.c.h.b16 %v523
        %v656 = vunpack.c.l.b16 %v524
        %v657 = vunpack.c.h.b16 %v524
        %v658 = vunpack.c.l.b16 %v525
        %v659 = vunpack.c.h.b16 %v525
        %v660 = vunpack.c.l.b16 %v526
        %v661 = vunpack.c.h.b16 %v526
        %v662 = vunpack.c.l.b16 %v527
        %v663 = vunpack.c.h.b16 %v527
        %v664 = vunpack.c.l.b16 %v528
        %v665 = vunpack.c.h.b16 %v528
        %v666 = vunpack.c.l.b16 %v529
        %v667 = vunpack.c.h.b16 %v529
        %v668 = vunpack.c.l.b16 %v530
        %v669 = vunpack.c.h.b16 %v530
        %v670 = vunpack.c.l.b16 %v531
        %v671 = vunpack.c.h.b16 %v531
        %v672 = vunpack.c.l.b16 %v532
        %v673 = vunpack.c.h.b16 %v532
        %v674 = vunpack.c.l.b16 %v533
        %v675 = vunpack.c.h.b16 %v533
        %v676 = vunpack.c.l.b16 %v534
        %v677 = vunpack.c.h.b16 %v534
        %v678 = vunpack.c.l.b16 %v535
        %v679 = vunpack.c.h.b16 %v535
        %v680 = vunpack.c.l.b16 %v536
        %v681 = vunpack.c.h.b16 %v536
        %v682 = vunpack.c.l.b16 %v537
        %v683 = vunpack.c.h.b16 %v537
        %v684 = vunpack.c.l.b16 %v538
        %v685 = vunpack.c.h.b16 %v538
        %v686 = vunpack.c.l.b16 %v539
        %v687 = vunpack.c.h.b16 %v539
        %v688 = vunpack.c.l.b16 %v540
        %v689 = vunpack.c.h.b16 %v540
        %v690 = vunpack.c.l.b16 %v541
        %v691 = vunpack.c.h.b16 %v541
        %v692 = vunpack.c.l.b16 %v542
        %v693 = vunpack.c.h.b16 %v542
        %v694 = vunpack.c.l.b16 %v543
        %v695 = vunpack.c.h.b16 %v543
        %v696 = vunpack.c.l.b16 %v544
        %v697 = vunpack.c.h.b16 %v544
        %v698 = vunpack.c.l.b16 %v545
        %v699 = vunpack.c.h.b16 %v545
        %v700 = vunpack.c.l.b16 %v546
        %v701 = vunpack.c.h.b16 %v546
        %v702 = vunpack.c.l.b16 %v547
        %v703 = vunpack.c.h.b16 %v547
        %v704 = vunpack.c.l.b16 %v548
        %v705 = vunpack.c.h.b16 %v548
        %v706 = vunpack.c.l.b16 %v549
        %v707 = vunpack.c.h.b16 %v549
        %v708 = vunpack.c.l.b16 %v550
        %v709 = vunpack.c.h.b16 %v550
        %v710 = vunpack.c.l.b16 %v551
        %v711 = vunpack.c.h.b16 %v551
        %v712 = vunpack.c.l.b16 %v552
        %v713 = vunpack.c.h.b16 %v552
        %v714 = vpack.c.b16 %v652, %v650
        %v715 = vpack.c.b16 %v653, %v651
        %v716 = vpack.c.b16 %v656, %v654
        %v717 = vpack.c.b16 %v657, %v655
        %v718 = vpack.c.b16 %v660, %v658
        %v719 = vpack.c.b16 %v661, %v659
        %v720 = vpack.c.b16 %v664, %v662
        %v721 = vpack.c.b16 %v665, %v663
        %v722 = vpack.c.b16 %v668, %v666
        %v723 = vpack.c.b16 %v669, %v667
        %v724 = vpack.c.b16 %v672, %v670
        %v725 = vpack.c.b16 %v673, %v671
        %v726 = vpack.c.b16 %v676, %v674
        %v727 = vpack.c.b16 %v677, %v675
        %v728 = vpack.c.b16 %v680, %v678
        %v729 = vpack.c.b16 %v681, %v679
        %v730 = vpack.c.b16 %v684, %v682
        %v731 = vpack.c.b16 %v685, %v683
        %v732 = vpack.c.b16 %v688, %v686
        %v733 = vpack.c.b16 %v689, %v687
        %v734 = vpack.c.b16 %v692, %v690
        %v735 = vpack.c.b16 %v693, %v691
        %v736 = vpack.c.b16 %v696, %v694
        %v737 = vpack.c.b16 %v697, %v695
        %v738 = vpack.c.b16 %v700, %v698
        %v739 = vpack.c.b16 %v701, %v699
        %v740 = vpack.c.b16 %v704, %v702
        %v741 = vpack.c.b16 %v705, %v703
        %v742 = vpack.c.b16 %v708, %v706
        %v743 = vpack.c.b16 %v709, %v707
        %v744 = vpack.c.b16 %v712, %v710
        %v745 = vpack.c.b16 %v713, %v711
        %778 = vmatprep.subr.bf16.mxu0 %v715
        %779 = vmatpush1.bf16.msra.mxu0 %v714
        %780 = vmatprep.subr.bf16.mxu0 %v717
        %781 = vmatpush1.bf16.msra.mxu0 %v716
        %782 = vmatprep.subr.bf16.mxu0 %v719
        %783 = vmatpush1.bf16.msra.mxu0 %v718
        %784 = vmatprep.subr.bf16.mxu0 %v721
        %785 = vmatpush1.bf16.msra.mxu0 %v720
        %786 = vmatprep.subr.bf16.mxu0 %v723
        %787 = vmatpush1.bf16.msra.mxu0 %v722
        %788 = vmatprep.subr.bf16.mxu0 %v725
        %789 = vmatpush1.bf16.msra.mxu0 %v724
        %790 = vmatprep.subr.bf16.mxu0 %v727
        %791 = vmatpush1.bf16.msra.mxu0 %v726
        %792 = vmatprep.subr.bf16.mxu0 %v729
        %793 = vmatpush1.bf16.msra.mxu0 %v728
        %794 = vmatprep.subr.bf16.mxu0 %v731
        %795 = vmatpush1.bf16.msra.mxu0 %v730
        %796 = vmatprep.subr.bf16.mxu0 %v733
        %797 = vmatpush1.bf16.msra.mxu0 %v732
        %798 = vmatprep.subr.bf16.mxu0 %v735
        %799 = vmatpush1.bf16.msra.mxu0 %v734
        %800 = vmatprep.subr.bf16.mxu0 %v737
        %801 = vmatpush1.bf16.msra.mxu0 %v736
        %802 = vmatprep.subr.bf16.mxu0 %v739
        %803 = vmatpush1.bf16.msra.mxu0 %v738
        %804 = vmatprep.subr.bf16.mxu0 %v741
        %805 = vmatpush1.bf16.msra.mxu0 %v740
        %806 = vmatprep.subr.bf16.mxu0 %v743
        %807 = vmatpush1.bf16.msra.mxu0 %v742
        %808 = vmatprep.subr.bf16.mxu0 %v745
        %809 = vmatpush1.bf16.msra.mxu0 %v744
        %810 = vmatprep.mubr.bf16.mxu0 %v469
        %811 = vmatmul.mubr.bf16.gmra.mrb[0].mxu0 %v457
        %v812 = vpop.f32.mrb[0].mxu0
        %v813 = vadd.f32 %v611, %v812
        %v814 = vpop.f32.mrb[0].mxu0
        %v815 = vadd.f32 %v615, %v814
        %v816 = vpop.f32.mrb[0].mxu0
        %v817 = vadd.f32 %v611, %v816
        %v818 = vpop.f32.mrb[0].mxu0
        %v819 = vadd.f32 %v615, %v818
        %820 = vmatprep.mubr.bf16.mxu0 %v470
        %821 = vmatmul.mubr.bf16.gmra.mrb[0].mxu0 %v458
        %v822 = vpop.f32.mrb[0].mxu0
        %v823 = vadd.f32 %v611, %v822
        %v824 = vpop.f32.mrb[0].mxu0
        %v825 = vadd.f32 %v615, %v824
        %v826 = vpop.f32.mrb[0].mxu0
        %v827 = vadd.f32 %v611, %v826
        %v828 = vpop.f32.mrb[0].mxu0
        %v829 = vadd.f32 %v615, %v828
        %830 = vmatprep.mubr.bf16.mxu0 %v471
        %831 = vmatmul.mubr.bf16.gmra.mrb[0].mxu0 %v459
        %v832 = vpop.f32.mrb[0].mxu0
        %v833 = vadd.f32 %v611, %v832
        %v834 = vpop.f32.mrb[0].mxu0
        %v835 = vadd.f32 %v615, %v834
        %v836 = vpop.f32.mrb[0].mxu0
        %v837 = vadd.f32 %v611, %v836
        %v838 = vpop.f32.mrb[0].mxu0
        %v839 = vadd.f32 %v615, %v838
        %840 = vmatprep.mubr.bf16.mxu0 %v472
        %841 = vmatmul.mubr.bf16.gmra.mrb[0].mxu0 %v460
        %v842 = vpop.f32.mrb[0].mxu0
        %v843 = vadd.f32 %v611, %v842
        %v844 = vpop.f32.mrb[0].mxu0
        %v845 = vadd.f32 %v615, %v844
        %v846 = vpop.f32.mrb[0].mxu0
        %v847 = vadd.f32 %v611, %v846
        %v848 = vpop.f32.mrb[0].mxu0
        %v849 = vadd.f32 %v615, %v848
        %850 = vdwg.mxu0
        %v852 = vlaneseq
        %v853 = vshrl.u32 %v852, 7
        %v854 = vsub.s32 0, %v853
        %v855 = vrot.slane %v603, %v854
        %v856 = vlaneseq
        %v857 = vshrl.u32 %v856, 7
        %v858 = vsub.s32 1, %v857
        %v859 = vrot.slane %v603, %v858
        %v894 = vunpack.c.l.b16 %v553
        %v895 = vunpack.c.h.b16 %v553
        %v896 = vunpack.c.l.b16 %v554
        %v897 = vunpack.c.h.b16 %v554
        %v898 = vunpack.c.l.b16 %v555
        %v899 = vunpack.c.h.b16 %v555
        %v900 = vunpack.c.l.b16 %v556
        %v901 = vunpack.c.h.b16 %v556
        %v902 = vunpack.c.l.b16 %v557
        %v903 = vunpack.c.h.b16 %v557
        %v904 = vunpack.c.l.b16 %v558
        %v905 = vunpack.c.h.b16 %v558
        %v906 = vunpack.c.l.b16 %v559
        %v907 = vunpack.c.h.b16 %v559
        %v908 = vunpack.c.l.b16 %v560
        %v909 = vunpack.c.h.b16 %v560
        %v910 = vunpack.c.l.b16 %v561
        %v911 = vunpack.c.h.b16 %v561
        %v912 = vunpack.c.l.b16 %v562
        %v913 = vunpack.c.h.b16 %v562
        %v914 = vunpack.c.l.b16 %v563
        %v915 = vunpack.c.h.b16 %v563
        %v916 = vunpack.c.l.b16 %v564
        %v917 = vunpack.c.h.b16 %v564
        %v918 = vunpack.c.l.b16 %v565
        %v919 = vunpack.c.h.b16 %v565
        %v920 = vunpack.c.l.b16 %v566
        %v921 = vunpack.c.h.b16 %v566
        %v922 = vunpack.c.l.b16 %v567
        %v923 = vunpack.c.h.b16 %v567
        %v924 = vunpack.c.l.b16 %v568
        %v925 = vunpack.c.h.b16 %v568
        %v926 = vunpack.c.l.b16 %v569
        %v927 = vunpack.c.h.b16 %v569
        %v928 = vunpack.c.l.b16 %v570
        %v929 = vunpack.c.h.b16 %v570
        %v930 = vunpack.c.l.b16 %v571
        %v931 = vunpack.c.h.b16 %v571
        %v932 = vunpack.c.l.b16 %v572
        %v933 = vunpack.c.h.b16 %v572
        %v934 = vunpack.c.l.b16 %v573
        %v935 = vunpack.c.h.b16 %v573
        %v936 = vunpack.c.l.b16 %v574
        %v937 = vunpack.c.h.b16 %v574
        %v938 = vunpack.c.l.b16 %v575
        %v939 = vunpack.c.h.b16 %v575
        %v940 = vunpack.c.l.b16 %v576
        %v941 = vunpack.c.h.b16 %v576
        %v942 = vunpack.c.l.b16 %v577
        %v943 = vunpack.c.h.b16 %v577
        %v944 = vunpack.c.l.b16 %v578
        %v945 = vunpack.c.h.b16 %v578
        %v946 = vunpack.c.l.b16 %v579
        %v947 = vunpack.c.h.b16 %v579
        %v948 = vunpack.c.l.b16 %v580
        %v949 = vunpack.c.h.b16 %v580
        %v950 = vunpack.c.l.b16 %v581
        %v951 = vunpack.c.h.b16 %v581
        %v952 = vunpack.c.l.b16 %v582
        %v953 = vunpack.c.h.b16 %v582
        %v954 = vunpack.c.l.b16 %v583
        %v955 = vunpack.c.h.b16 %v583
        %v956 = vunpack.c.l.b16 %v584
        %v957 = vunpack.c.h.b16 %v584
        %v958 = vpack.c.b16 %v896, %v894
        %v959 = vpack.c.b16 %v897, %v895
        %v960 = vpack.c.b16 %v900, %v898
        %v961 = vpack.c.b16 %v901, %v899
        %v962 = vpack.c.b16 %v904, %v902
        %v963 = vpack.c.b16 %v905, %v903
        %v964 = vpack.c.b16 %v908, %v906
        %v965 = vpack.c.b16 %v909, %v907
        %v966 = vpack.c.b16 %v912, %v910
        %v967 = vpack.c.b16 %v913, %v911
        %v968 = vpack.c.b16 %v916, %v914
        %v969 = vpack.c.b16 %v917, %v915
        %v970 = vpack.c.b16 %v920, %v918
        %v971 = vpack.c.b16 %v921, %v919
        %v972 = vpack.c.b16 %v924, %v922
        %v973 = vpack.c.b16 %v925, %v923
        %v974 = vpack.c.b16 %v928, %v926
        %v975 = vpack.c.b16 %v929, %v927
        %v976 = vpack.c.b16 %v932, %v930
        %v977 = vpack.c.b16 %v933, %v931
        %v978 = vpack.c.b16 %v936, %v934
        %v979 = vpack.c.b16 %v937, %v935
        %v980 = vpack.c.b16 %v940, %v938
        %v981 = vpack.c.b16 %v941, %v939
        %v982 = vpack.c.b16 %v944, %v942
        %v983 = vpack.c.b16 %v945, %v943
        %v984 = vpack.c.b16 %v948, %v946
        %v985 = vpack.c.b16 %v949, %v947
        %v986 = vpack.c.b16 %v952, %v950
        %v987 = vpack.c.b16 %v953, %v951
        %v988 = vpack.c.b16 %v956, %v954
        %v989 = vpack.c.b16 %v957, %v955
        %1022 = vmatprep.subr.bf16.mxu0 %v959
        %1023 = vmatpush1.bf16.msra.mxu0 %v958
        %1024 = vmatprep.subr.bf16.mxu0 %v961
        %1025 = vmatpush1.bf16.msra.mxu0 %v960
        %1026 = vmatprep.subr.bf16.mxu0 %v963
        %1027 = vmatpush1.bf16.msra.mxu0 %v962
        %1028 = vmatprep.subr.bf16.mxu0 %v965
        %1029 = vmatpush1.bf16.msra.mxu0 %v964
        %1030 = vmatprep.subr.bf16.mxu0 %v967
        %1031 = vmatpush1.bf16.msra.mxu0 %v966
        %1032 = vmatprep.subr.bf16.mxu0 %v969
        %1033 = vmatpush1.bf16.msra.mxu0 %v968
        %1034 = vmatprep.subr.bf16.mxu0 %v971
        %1035 = vmatpush1.bf16.msra.mxu0 %v970
        %1036 = vmatprep.subr.bf16.mxu0 %v973
        %1037 = vmatpush1.bf16.msra.mxu0 %v972
        %1038 = vmatprep.subr.bf16.mxu0 %v975
        %1039 = vmatpush1.bf16.msra.mxu0 %v974
        %1040 = vmatprep.subr.bf16.mxu0 %v977
        %1041 = vmatpush1.bf16.msra.mxu0 %v976
        %1042 = vmatprep.subr.bf16.mxu0 %v979
        %1043 = vmatpush1.bf16.msra.mxu0 %v978
        %1044 = vmatprep.subr.bf16.mxu0 %v981
        %1045 = vmatpush1.bf16.msra.mxu0 %v980
        %1046 = vmatprep.subr.bf16.mxu0 %v983
        %1047 = vmatpush1.bf16.msra.mxu0 %v982
        %1048 = vmatprep.subr.bf16.mxu0 %v985
        %1049 = vmatpush1.bf16.msra.mxu0 %v984
        %1050 = vmatprep.subr.bf16.mxu0 %v987
        %1051 = vmatpush1.bf16.msra.mxu0 %v986
        %1052 = vmatprep.subr.bf16.mxu0 %v989
        %1053 = vmatpush1.bf16.msra.mxu0 %v988
        %1054 = vmatprep.mubr.bf16.mxu0 %v513
        %1055 = vmatmul.mubr.bf16.gmra.mrb[0].mxu0 %v489
        %v1056 = vpop.f32.mrb[0].mxu0
        %v1057 = vadd.f32 %v855, %v1056
        %v1058 = vpop.f32.mrb[0].mxu0
        %v1059 = vadd.f32 %v859, %v1058
        %v1060 = vpop.f32.mrb[0].mxu0
        %v1061 = vadd.f32 %v855, %v1060
        %v1062 = vpop.f32.mrb[0].mxu0
        %v1063 = vadd.f32 %v859, %v1062
        %1064 = vmatprep.mubr.bf16.mxu0 %v514
        %1065 = vmatmul.mubr.bf16.gmra.mrb[0].mxu0 %v490
        %v1066 = vpop.f32.mrb[0].mxu0
        %v1067 = vadd.f32 %v855, %v1066
        %v1068 = vpop.f32.mrb[0].mxu0
        %v1069 = vadd.f32 %v859, %v1068
        %v1070 = vpop.f32.mrb[0].mxu0
        %v1071 = vadd.f32 %v855, %v1070
        %v1072 = vpop.f32.mrb[0].mxu0
        %v1073 = vadd.f32 %v859, %v1072
        %1074 = vmatprep.mubr.bf16.mxu0 %v515
        %1075 = vmatmul.mubr.bf16.gmra.mrb[0].mxu0 %v491
        %v1076 = vpop.f32.mrb[0].mxu0
        %v1077 = vadd.f32 %v855, %v1076
        %v1078 = vpop.f32.mrb[0].mxu0
        %v1079 = vadd.f32 %v859, %v1078
        %v1080 = vpop.f32.mrb[0].mxu0
        %v1081 = vadd.f32 %v855, %v1080
        %v1082 = vpop.f32.mrb[0].mxu0
        %v1083 = vadd.f32 %v859, %v1082
        %1084 = vmatprep.mubr.bf16.mxu0 %v516
        %1085 = vmatmul.mubr.bf16.gmra.mrb[0].mxu0 %v492
        %v1086 = vpop.f32.mrb[0].mxu0
        %v1087 = vadd.f32 %v855, %v1086
        %v1088 = vpop.f32.mrb[0].mxu0
        %v1089 = vadd.f32 %v859, %v1088
        %v1090 = vpop.f32.mrb[0].mxu0
        %v1091 = vadd.f32 %v855, %v1090
        %v1092 = vpop.f32.mrb[0].mxu0
        %v1093 = vadd.f32 %v859, %v1092
        %1094 = vmatprep.mubr.bf16.mxu0 %v517
        %1095 = vmatmul.mubr.bf16.gmra.mrb[0].mxu0 %v493
        %v1096 = vpop.f32.mrb[0].mxu0
        %v1097 = vadd.f32 %v855, %v1096
        %v1098 = vpop.f32.mrb[0].mxu0
        %v1099 = vadd.f32 %v859, %v1098
        %v1100 = vpop.f32.mrb[0].mxu0
        %v1101 = vadd.f32 %v855, %v1100
        %v1102 = vpop.f32.mrb[0].mxu0
        %v1103 = vadd.f32 %v859, %v1102
        %1104 = vmatprep.mubr.bf16.mxu0 %v518
        %1105 = vmatmul.mubr.bf16.gmra.mrb[0].mxu0 %v494
        %v1106 = vpop.f32.mrb[0].mxu0
        %v1107 = vadd.f32 %v855, %v1106
        %v1108 = vpop.f32.mrb[0].mxu0
        %v1109 = vadd.f32 %v859, %v1108
        %v1110 = vpop.f32.mrb[0].mxu0
        %v1111 = vadd.f32 %v855, %v1110
        %v1112 = vpop.f32.mrb[0].mxu0
        %v1113 = vadd.f32 %v859, %v1112
        %1114 = vmatprep.mubr.bf16.mxu0 %v519
        %1115 = vmatmul.mubr.bf16.gmra.mrb[0].mxu0 %v495
        %v1116 = vpop.f32.mrb[0].mxu0
        %v1117 = vadd.f32 %v855, %v1116
        %v1118 = vpop.f32.mrb[0].mxu0
        %v1119 = vadd.f32 %v859, %v1118
        %v1120 = vpop.f32.mrb[0].mxu0
        %v1121 = vadd.f32 %v855, %v1120
        %v1122 = vpop.f32.mrb[0].mxu0
        %v1123 = vadd.f32 %v859, %v1122
        %1124 = vmatprep.mubr.bf16.mxu0 %v520
        %1125 = vmatmul.mubr.bf16.gmra.mrb[0].mxu0 %v496
        %v1126 = vpop.f32.mrb[0].mxu0
        %v1127 = vadd.f32 %v855, %v1126
        %v1128 = vpop.f32.mrb[0].mxu0
        %v1129 = vadd.f32 %v859, %v1128
        %v1130 = vpop.f32.mrb[0].mxu0
        %v1131 = vadd.f32 %v855, %v1130
        %v1132 = vpop.f32.mrb[0].mxu0
        %v1133 = vadd.f32 %v859, %v1132
        %1134 = vdwg.mxu0
        %v1136 = vlaneseq
        %v1137 = vshrl.u32 %v1136, 7
        %v1138 = vsub.s32 0, %v1137
        %v1139 = vrot.slane %v605, %v1138
        %v1140 = vlaneseq
        %v1141 = vshrl.u32 %v1140, 7
        %v1142 = vsub.s32 1, %v1141
        %v1143 = vrot.slane %v605, %v1142
        %v1162 = vunpack.c.l.b16 %v585
        %v1163 = vunpack.c.h.b16 %v585
        %v1164 = vunpack.c.l.b16 %v586
        %v1165 = vunpack.c.h.b16 %v586
        %v1166 = vunpack.c.l.b16 %v587
        %v1167 = vunpack.c.h.b16 %v587
        %v1168 = vunpack.c.l.b16 %v588
        %v1169 = vunpack.c.h.b16 %v588
        %v1170 = vunpack.c.l.b16 %v589
        %v1171 = vunpack.c.h.b16 %v589
        %v1172 = vunpack.c.l.b16 %v590
        %v1173 = vunpack.c.h.b16 %v590
        %v1174 = vunpack.c.l.b16 %v591
        %v1175 = vunpack.c.h.b16 %v591
        %v1176 = vunpack.c.l.b16 %v592
        %v1177 = vunpack.c.h.b16 %v592
        %v1178 = vunpack.c.l.b16 %v593
        %v1179 = vunpack.c.h.b16 %v593
        %v1180 = vunpack.c.l.b16 %v594
        %v1181 = vunpack.c.h.b16 %v594
        %v1182 = vunpack.c.l.b16 %v595
        %v1183 = vunpack.c.h.b16 %v595
        %v1184 = vunpack.c.l.b16 %v596
        %v1185 = vunpack.c.h.b16 %v596
        %v1186 = vunpack.c.l.b16 %v597
        %v1187 = vunpack.c.h.b16 %v597
        %v1188 = vunpack.c.l.b16 %v598
        %v1189 = vunpack.c.h.b16 %v598
        %v1190 = vunpack.c.l.b16 %v599
        %v1191 = vunpack.c.h.b16 %v599
        %v1192 = vunpack.c.l.b16 %v600
        %v1193 = vunpack.c.h.b16 %v600
        %v1194 = vpack.c.b16 %v1164, %v1162
        %v1195 = vpack.c.b16 %v1165, %v1163
        %v1196 = vpack.c.b16 %v1168, %v1166
        %v1197 = vpack.c.b16 %v1169, %v1167
        %v1198 = vpack.c.b16 %v1172, %v1170
        %v1199 = vpack.c.b16 %v1173, %v1171
        %v1200 = vpack.c.b16 %v1176, %v1174
        %v1201 = vpack.c.b16 %v1177, %v1175
        %v1202 = vpack.c.b16 %v1180, %v1178
        %v1203 = vpack.c.b16 %v1181, %v1179
        %v1204 = vpack.c.b16 %v1184, %v1182
        %v1205 = vpack.c.b16 %v1185, %v1183
        %v1206 = vpack.c.b16 %v1188, %v1186
        %v1207 = vpack.c.b16 %v1189, %v1187
        %v1208 = vpack.c.b16 %v1192, %v1190
        %v1209 = vpack.c.b16 %v1193, %v1191
        %1226 = vmatprep.subr.bf16.mxu0 %v1195
        %1227 = vmatpush1.bf16.msra.mxu0 %v1194
        %1228 = vmatprep.subr.bf16.mxu0 %v1197
        %1229 = vmatpush1.bf16.msra.mxu0 %v1196
        %1230 = vmatprep.subr.bf16.mxu0 %v1199
        %1231 = vmatpush1.bf16.msra.mxu0 %v1198
        %1232 = vmatprep.subr.bf16.mxu0 %v1201
        %1233 = vmatpush1.bf16.msra.mxu0 %v1200
        %1234 = vmatprep.subr.bf16.mxu0 %v1203
        %1235 = vmatpush1.bf16.msra.mxu0 %v1202
        %1236 = vmatprep.subr.bf16.mxu0 %v1205
        %1237 = vmatpush1.bf16.msra.mxu0 %v1204
        %1238 = vmatprep.subr.bf16.mxu0 %v1207
        %1239 = vmatpush1.bf16.msra.mxu0 %v1206
        %1240 = vmatprep.subr.bf16.mxu0 %v1209
        %1241 = vmatpush1.bf16.msra.mxu0 %v1208
        %1242 = vmatprep.subr.bf16.mxu0 0
        %1243 = vmatpush1.bf16.msra.mxu0 0
        %1244 = vmatprep.subr.bf16.mxu0 0
        %1245 = vmatpush1.bf16.msra.mxu0 0
        %1246 = vmatprep.subr.bf16.mxu0 0
        %1247 = vmatpush1.bf16.msra.mxu0 0
        %1248 = vmatprep.subr.bf16.mxu0 0
        %1249 = vmatpush1.bf16.msra.mxu0 0
        %1250 = vmatprep.subr.bf16.mxu0 0
        %1251 = vmatpush1.bf16.msra.mxu0 0
        %1252 = vmatprep.subr.bf16.mxu0 0
        %1253 = vmatpush1.bf16.msra.mxu0 0
        %1254 = vmatprep.subr.bf16.mxu0 0
        %1255 = vmatpush1.bf16.msra.mxu0 0
        %1256 = vmatprep.subr.bf16.mxu0 0
        %1257 = vmatpush1.bf16.msra.mxu0 0
        %1258 = vmatprep.mubr.bf16.mxu0 0
        %1259 = vmatmul.mubr.bf16.gmra.mrb[0].mxu0 %v489
        %v1260 = vpop.f32.mrb[0].mxu0
        %v1261 = vadd.f32 %v1139, %v1260
        %v1262 = vpop.f32.mrb[0].mxu0
        %v1263 = vadd.f32 %v1143, %v1262
        %v1264 = vpop.f32.mrb[0].mxu0
        %v1265 = vadd.f32 %v1139, %v1264
        %v1266 = vpop.f32.mrb[0].mxu0
        %v1267 = vadd.f32 %v1143, %v1266
        %1268 = vmatprep.mubr.bf16.mxu0 0
        %1269 = vmatmul.mubr.bf16.gmra.mrb[0].mxu0 %v490
        %v1270 = vpop.f32.mrb[0].mxu0
        %v1271 = vadd.f32 %v1139, %v1270
        %v1272 = vpop.f32.mrb[0].mxu0
        %v1273 = vadd.f32 %v1143, %v1272
        %v1274 = vpop.f32.mrb[0].mxu0
        %v1275 = vadd.f32 %v1139, %v1274
        %v1276 = vpop.f32.mrb[0].mxu0
        %v1277 = vadd.f32 %v1143, %v1276
        %1278 = vmatprep.mubr.bf16.mxu0 0
        %1279 = vmatmul.mubr.bf16.gmra.mrb[0].mxu0 %v491
        %v1280 = vpop.f32.mrb[0].mxu0
        %v1281 = vadd.f32 %v1139, %v1280
        %v1282 = vpop.f32.mrb[0].mxu0
        %v1283 = vadd.f32 %v1143, %v1282
        %v1284 = vpop.f32.mrb[0].mxu0
        %v1285 = vadd.f32 %v1139, %v1284
        %v1286 = vpop.f32.mrb[0].mxu0
        %v1287 = vadd.f32 %v1143, %v1286
        %1288 = vmatprep.mubr.bf16.mxu0 0
        %1289 = vmatmul.mubr.bf16.gmra.mrb[0].mxu0 %v492
        %v1290 = vpop.f32.mrb[0].mxu0
        %v1291 = vadd.f32 %v1139, %v1290
        %v1292 = vpop.f32.mrb[0].mxu0
        %v1293 = vadd.f32 %v1143, %v1292
        %v1294 = vpop.f32.mrb[0].mxu0
        %v1295 = vadd.f32 %v1139, %v1294
        %v1296 = vpop.f32.mrb[0].mxu0
        %v1297 = vadd.f32 %v1143, %v1296
        %1298 = vmatprep.mubr.bf16.mxu0 0
        %1299 = vmatmul.mubr.bf16.gmra.mrb[0].mxu0 %v493
        %v1300 = vpop.f32.mrb[0].mxu0
        %v1301 = vadd.f32 %v1139, %v1300
        %v1302 = vpop.f32.mrb[0].mxu0
        %v1303 = vadd.f32 %v1143, %v1302
        %v1304 = vpop.f32.mrb[0].mxu0
        %v1305 = vadd.f32 %v1139, %v1304
        %v1306 = vpop.f32.mrb[0].mxu0
        %v1307 = vadd.f32 %v1143, %v1306
        %1308 = vmatprep.mubr.bf16.mxu0 0
        %1309 = vmatmul.mubr.bf16.gmra.mrb[0].mxu0 %v494
        %v1310 = vpop.f32.mrb[0].mxu0
        %v1311 = vadd.f32 %v1139, %v1310
        %v1312 = vpop.f32.mrb[0].mxu0
        %v1313 = vadd.f32 %v1143, %v1312
        %v1314 = vpop.f32.mrb[0].mxu0
        %v1315 = vadd.f32 %v1139, %v1314
        %v1316 = vpop.f32.mrb[0].mxu0
        %v1317 = vadd.f32 %v1143, %v1316
        %1318 = vmatprep.mubr.bf16.mxu0 0
        %1319 = vmatmul.mubr.bf16.gmra.mrb[0].mxu0 %v495
        %v1320 = vpop.f32.mrb[0].mxu0
        %v1321 = vadd.f32 %v1139, %v1320
        %v1322 = vpop.f32.mrb[0].mxu0
        %v1323 = vadd.f32 %v1143, %v1322
        %v1324 = vpop.f32.mrb[0].mxu0
        %v1325 = vadd.f32 %v1139, %v1324
        %v1326 = vpop.f32.mrb[0].mxu0
        %v1327 = vadd.f32 %v1143, %v1326
        %1328 = vmatprep.mubr.bf16.mxu0 0
        %1329 = vmatmul.mubr.bf16.gmra.mrb[0].mxu0 %v496
        %v1330 = vpop.f32.mrb[0].mxu0
        %v1331 = vadd.f32 %v1139, %v1330
        %v1332 = vpop.f32.mrb[0].mxu0
        %v1333 = vadd.f32 %v1143, %v1332
        %v1334 = vpop.f32.mrb[0].mxu0
        %v1335 = vadd.f32 %v1139, %v1334
        %v1336 = vpop.f32.mrb[0].mxu0
        %v1337 = vadd.f32 %v1143, %v1336
        %1338 = vdwg.mxu0
        %v1339 = vpack.c.bf16 %v817, %v813
        %v1340 = vpack.c.bf16 %v819, %v815
        %v1341 = vpack.c.bf16 %v827, %v823
        %v1342 = vpack.c.bf16 %v829, %v825
        %v1343 = vpack.c.bf16 %v837, %v833
        %v1344 = vpack.c.bf16 %v839, %v835
        %v1345 = vpack.c.bf16 %v847, %v843
        %v1346 = vpack.c.bf16 %v849, %v845
        %v1347 = vpack.c.bf16 %v1061, %v1057
        %v1348 = vpack.c.bf16 %v1063, %v1059
        %v1349 = vpack.c.bf16 %v1071, %v1067
        %v1350 = vpack.c.bf16 %v1073, %v1069
        %v1351 = vpack.c.bf16 %v1081, %v1077
        %v1352 = vpack.c.bf16 %v1083, %v1079
        %v1353 = vpack.c.bf16 %v1091, %v1087
        %v1354 = vpack.c.bf16 %v1093, %v1089
        %v1355 = vpack.c.bf16 %v1101, %v1097
        %v1356 = vpack.c.bf16 %v1103, %v1099
        %v1357 = vpack.c.bf16 %v1111, %v1107
        %v1358 = vpack.c.bf16 %v1113, %v1109
        %v1359 = vpack.c.bf16 %v1121, %v1117
        %v1360 = vpack.c.bf16 %v1123, %v1119
        %v1361 = vpack.c.bf16 %v1131, %v1127
        %v1362 = vpack.c.bf16 %v1133, %v1129
        %v1363 = vpack.c.bf16 %v1265, %v1261
        %v1364 = vpack.c.bf16 %v1267, %v1263
        %v1365 = vpack.c.bf16 %v1275, %v1271
        %v1366 = vpack.c.bf16 %v1277, %v1273
        %v1367 = vpack.c.bf16 %v1285, %v1281
        %v1368 = vpack.c.bf16 %v1287, %v1283
        %v1369 = vpack.c.bf16 %v1295, %v1291
        %v1370 = vpack.c.bf16 %v1297, %v1293
        %v1371 = vpack.c.bf16 %v1305, %v1301
        %v1372 = vpack.c.bf16 %v1307, %v1303
        %v1373 = vpack.c.bf16 %v1315, %v1311
        %v1374 = vpack.c.bf16 %v1317, %v1313
        %v1375 = vpack.c.bf16 %v1325, %v1321
        %v1376 = vpack.c.bf16 %v1327, %v1323
        %v1377 = vpack.c.bf16 %v1335, %v1331
        %v1378 = vpack.c.bf16 %v1337, %v1333
        %1379 = vmatprep.subr.bf16.mxu0 0
        %1380 = vmatpush1.bf16.xpose.msra.mxu0 %v1347
        %1381 = vmatprep.subr.bf16.mxu0 0
        %1382 = vmatpush1.bf16.xpose.msra.mxu0 %v1349
        %1383 = vmatprep.subr.bf16.mxu0 0
        %1384 = vmatpush1.bf16.xpose.msra.mxu0 0
        %1385 = vmatprep.subr.bf16.mxu0 0
        %1386 = vmatpush1.bf16.xpose.msra.mxu0 0
        %1387 = vmatprep.subr.bf16.mxu0 0
        %1388 = vmatpush1.bf16.xpose.msra.mxu0 0
        %1389 = vmatprep.subr.bf16.mxu0 0
        %1390 = vmatpush1.bf16.xpose.msra.mxu0 0
        %1391 = vmatprep.subr.bf16.mxu0 0
        %1392 = vmatpush1.bf16.xpose.msra.mxu0 0
        %1393 = vmatprep.subr.bf16.mxu0 0
        %1394 = vmatpush1.bf16.xpose.msra.mxu0 0
        %1395 = vmatprep.subr.bf16.mxu0 0
        %1396 = vmatpush1.bf16.xpose.msra.mxu0 0
        %1397 = vmatprep.subr.bf16.mxu0 0
        %1398 = vmatpush1.bf16.xpose.msra.mxu0 0
        %1399 = vmatprep.subr.bf16.mxu0 0
        %1400 = vmatpush1.bf16.xpose.msra.mxu0 0
        %1401 = vmatprep.subr.bf16.mxu0 0
        %1402 = vmatpush1.bf16.xpose.msra.mxu0 0
        %1403 = vmatprep.subr.bf16.mxu0 0
        %1404 = vmatpush1.bf16.xpose.msra.mxu0 0
        %1405 = vmatprep.subr.bf16.mxu0 0
        %1406 = vmatpush1.bf16.xpose.msra.mxu0 0
        %1407 = vmatprep.subr.bf16.mxu0 0
        %1408 = vmatpush1.bf16.xpose.msra.mxu0 0
        %1409 = vmatprep.subr.bf16.mxu0 0
        %1410 = vmatpush1.bf16.xpose.msra.mxu0 0
        %1411 = vmatprep.mubr.bf16.mxu0 0
        %1412 = vmatmul.mubr.bf16.gmra.mrb[0].mxu0 %v1339
        %v1413 = vpop.f32.mrb[0].mxu0
        %v1414 = vadd.f32 0.0, %v1413
        %v1415 = vpop.f32.mrb[0].mxu0
        %v1416 = vpop.f32.mrb[0].mxu0
        %v1417 = vadd.f32 0.0, %v1416
        %v1418 = vpop.f32.mrb[0].mxu0
        %1419 = vdwg.mxu0
        %vm1420 = vcmask 261120
        %v1421 = vsel %vm1420, %v1414, -inf
        %1422 = vmax.xlane.f32.xlu0 %v1421
        %v1423 = vpop.xlane.xlu0 %1422
        %v1424 = vsel %vm1420, %v1417, -inf
        %1425 = vmax.xlane.f32.xlu0 %v1424
        %v1426 = vpop.xlane.xlu0 %1425
        %v1427 = vsub.f32 %v1414, %v1423
        %v1428 = vsub.f32 %v1417, %v1426
        %v1429 = vmul.f32 %v1427, 1.442695
        %v1430 = vpow.pop %v1429
        %v1431 = vmul.f32 %v1428, 1.442695
        %v1432 = vpow.pop %v1431
        %v1433 = vsel %vm1420, %v1430, 0.0
        %1434 = vadd.xlane.f32.xlu0 %v1433
        %v1435 = vpop.xlane.xlu0 %1434
        %v1436 = vsel %vm1420, %v1432, 0.0
        %1437 = vadd.xlane.f32.xlu0 %v1436
        %v1438 = vpop.xlane.xlu0 %1437
        %v1439 = vrcp.pop %v1435
        %v1440 = vrcp.pop %v1438
        %v1441 = vmul.f32 %v1430, %v1439
        %v1442 = vmul.f32 %v1432, %v1440
        %v1443 = vpack.c.bf16 %v1442, %v1441
        %v1445 = vsel %vm1420, %v1443, 0
        %1447 = vmatprep.subr.bf16.mxu0 0
        %1448 = vmatpush1.bf16.msra.mxu0 %v1363
        %1449 = vmatprep.subr.bf16.mxu0 0
        %1450 = vmatpush1.bf16.msra.mxu0 %v1365
        %1451 = vmatprep.subr.bf16.mxu0 0
        %1452 = vmatpush1.bf16.msra.mxu0 0
        %1453 = vmatprep.subr.bf16.mxu0 0
        %1454 = vmatpush1.bf16.msra.mxu0 0
        %1455 = vmatprep.subr.bf16.mxu0 0
        %1456 = vmatpush1.bf16.msra.mxu0 0
        %1457 = vmatprep.subr.bf16.mxu0 0
        %1458 = vmatpush1.bf16.msra.mxu0 0
        %1459 = vmatprep.subr.bf16.mxu0 0
        %1460 = vmatpush1.bf16.msra.mxu0 0
        %1461 = vmatprep.subr.bf16.mxu0 0
        %1462 = vmatpush1.bf16.msra.mxu0 0
        %1463 = vmatprep.subr.bf16.mxu0 0
        %1464 = vmatpush1.bf16.msra.mxu0 0
        %1465 = vmatprep.subr.bf16.mxu0 0
        %1466 = vmatpush1.bf16.msra.mxu0 0
        %1467 = vmatprep.subr.bf16.mxu0 0
        %1468 = vmatpush1.bf16.msra.mxu0 0
        %1469 = vmatprep.subr.bf16.mxu0 0
        %1470 = vmatpush1.bf16.msra.mxu0 0
        %1471 = vmatprep.subr.bf16.mxu0 0
        %1472 = vmatpush1.bf16.msra.mxu0 0
        %1473 = vmatprep.subr.bf16.mxu0 0
        %1474 = vmatpush1.bf16.msra.mxu0 0
        %1475 = vmatprep.subr.bf16.mxu0 0
        %1476 = vmatpush1.bf16.msra.mxu0 0
        %1477 = vmatprep.subr.bf16.mxu0 0
        %1478 = vmatpush1.bf16.msra.mxu0 0
        %1479 = vmatprep.mubr.bf16.mxu0 0
        %1480 = vmatmul.mubr.bf16.gmra.mrb[0].mxu0 %v1445
        %v1481 = vpop.f32.mrb[0].mxu0
        %v1482 = vadd.f32 0.0, %v1481
        %v1483 = vpop.f32.mrb[0].mxu0
        %v1484 = vpop.f32.mrb[0].mxu0
        %v1485 = vadd.f32 0.0, %v1484
        %v1486 = vpop.f32.mrb[0].mxu0
        %1487 = vdwg.mxu0
        %1488 = vmatprep.subr.bf16.mxu0 0
        %1489 = vmatpush1.bf16.xpose.msra.mxu0 %v1348
        %1490 = vmatprep.subr.bf16.mxu0 0
        %1491 = vmatpush1.bf16.xpose.msra.mxu0 %v1350
        %1492 = vmatprep.subr.bf16.mxu0 0
        %1493 = vmatpush1.bf16.xpose.msra.mxu0 0
        %1494 = vmatprep.subr.bf16.mxu0 0
        %1495 = vmatpush1.bf16.xpose.msra.mxu0 0
        %1496 = vmatprep.subr.bf16.mxu0 0
        %1497 = vmatpush1.bf16.xpose.msra.mxu0 0
        %1498 = vmatprep.subr.bf16.mxu0 0
        %1499 = vmatpush1.bf16.xpose.msra.mxu0 0
        %1500 = vmatprep.subr.bf16.mxu0 0
        %1501 = vmatpush1.bf16.xpose.msra.mxu0 0
        %1502 = vmatprep.subr.bf16.mxu0 0
        %1503 = vmatpush1.bf16.xpose.msra.mxu0 0
        %1504 = vmatprep.subr.bf16.mxu0 0
        %1505 = vmatpush1.bf16.xpose.msra.mxu0 0
        %1506 = vmatprep.subr.bf16.mxu0 0
        %1507 = vmatpush1.bf16.xpose.msra.mxu0 0
        %1508 = vmatprep.subr.bf16.mxu0 0
        %1509 = vmatpush1.bf16.xpose.msra.mxu0 0
        %1510 = vmatprep.subr.bf16.mxu0 0
        %1511 = vmatpush1.bf16.xpose.msra.mxu0 0
        %1512 = vmatprep.subr.bf16.mxu0 0
        %1513 = vmatpush1.bf16.xpose.msra.mxu0 0
        %1514 = vmatprep.subr.bf16.mxu0 0
        %1515 = vmatpush1.bf16.xpose.msra.mxu0 0
        %1516 = vmatprep.subr.bf16.mxu0 0
        %1517 = vmatpush1.bf16.xpose.msra.mxu0 0
        %1518 = vmatprep.subr.bf16.mxu0 0
        %1519 = vmatpush1.bf16.xpose.msra.mxu0 0
        %1520 = vmatprep.mubr.bf16.mxu0 0
        %1521 = vmatmul.mubr.bf16.gmra.mrb[0].mxu0 %v1340
        %v1522 = vpop.f32.mrb[0].mxu0
        %v1523 = vadd.f32 0.0, %v1522
        %v1524 = vpop.f32.mrb[0].mxu0
        %v1525 = vpop.f32.mrb[0].mxu0
        %v1526 = vadd.f32 0.0, %v1525
        %v1527 = vpop.f32.mrb[0].mxu0
        %1528 = vdwg.mxu0
        %v1529 = vsel %vm1420, %v1523, -inf
        %1530 = vmax.xlane.f32.xlu0 %v1529
        %v1531 = vpop.xlane.xlu0 %1530
        %v1532 = vsel %vm1420, %v1526, -inf
        %1533 = vmax.xlane.f32.xlu0 %v1532
        %v1534 = vpop.xlane.xlu0 %1533
        %v1535 = vsub.f32 %v1523, %v1531
        %v1536 = vsub.f32 %v1526, %v1534
        %v1537 = vmul.f32 %v1535, 1.442695
        %v1538 = vpow.pop %v1537
        %v1539 = vmul.f32 %v1536, 1.442695
        %v1540 = vpow.pop %v1539
        %v1541 = vsel %vm1420, %v1538, 0.0
        %1542 = vadd.xlane.f32.xlu0 %v1541
        %v1543 = vpop.xlane.xlu0 %1542
        %v1544 = vsel %vm1420, %v1540, 0.0
        %1545 = vadd.xlane.f32.xlu0 %v1544
        %v1546 = vpop.xlane.xlu0 %1545
        %v1547 = vrcp.pop %v1543
        %v1548 = vrcp.pop %v1546
        %v1549 = vmul.f32 %v1538, %v1547
        %v1550 = vmul.f32 %v1540, %v1548
        %v1551 = vpack.c.bf16 %v1550, %v1549
        %v1553 = vsel %vm1420, %v1551, 0
        %1555 = vmatprep.subr.bf16.mxu0 0
        %1556 = vmatpush1.bf16.msra.mxu0 %v1364
        %1557 = vmatprep.subr.bf16.mxu0 0
        %1558 = vmatpush1.bf16.msra.mxu0 %v1366
        %1559 = vmatprep.subr.bf16.mxu0 0
        %1560 = vmatpush1.bf16.msra.mxu0 0
        %1561 = vmatprep.subr.bf16.mxu0 0
        %1562 = vmatpush1.bf16.msra.mxu0 0
        %1563 = vmatprep.subr.bf16.mxu0 0
        %1564 = vmatpush1.bf16.msra.mxu0 0
        %1565 = vmatprep.subr.bf16.mxu0 0
        %1566 = vmatpush1.bf16.msra.mxu0 0
        %1567 = vmatprep.subr.bf16.mxu0 0
        %1568 = vmatpush1.bf16.msra.mxu0 0
        %1569 = vmatprep.subr.bf16.mxu0 0
        %1570 = vmatpush1.bf16.msra.mxu0 0
        %1571 = vmatprep.subr.bf16.mxu0 0
        %1572 = vmatpush1.bf16.msra.mxu0 0
        %1573 = vmatprep.subr.bf16.mxu0 0
        %1574 = vmatpush1.bf16.msra.mxu0 0
        %1575 = vmatprep.subr.bf16.mxu0 0
        %1576 = vmatpush1.bf16.msra.mxu0 0
        %1577 = vmatprep.subr.bf16.mxu0 0
        %1578 = vmatpush1.bf16.msra.mxu0 0
        %1579 = vmatprep.subr.bf16.mxu0 0
        %1580 = vmatpush1.bf16.msra.mxu0 0
        %1581 = vmatprep.subr.bf16.mxu0 0
        %1582 = vmatpush1.bf16.msra.mxu0 0
        %1583 = vmatprep.subr.bf16.mxu0 0
        %1584 = vmatpush1.bf16.msra.mxu0 0
        %1585 = vmatprep.subr.bf16.mxu0 0
        %1586 = vmatpush1.bf16.msra.mxu0 0
        %1587 = vmatprep.mubr.bf16.mxu0 0
        %1588 = vmatmul.mubr.bf16.gmra.mrb[0].mxu0 %v1553
        %v1589 = vpop.f32.mrb[0].mxu0
        %v1590 = vadd.f32 0.0, %v1589
        %v1591 = vpop.f32.mrb[0].mxu0
        %v1592 = vpop.f32.mrb[0].mxu0
        %v1593 = vadd.f32 0.0, %v1592
        %v1594 = vpop.f32.mrb[0].mxu0
        %1595 = vdwg.mxu0
        %1596 = vmatprep.subr.bf16.mxu0 0
        %1597 = vmatpush1.bf16.xpose.msra.mxu0 %v1351
        %1598 = vmatprep.subr.bf16.mxu0 0
        %1599 = vmatpush1.bf16.xpose.msra.mxu0 %v1353
        %1600 = vmatprep.subr.bf16.mxu0 0
        %1601 = vmatpush1.bf16.xpose.msra.mxu0 0
        %1602 = vmatprep.subr.bf16.mxu0 0
        %1603 = vmatpush1.bf16.xpose.msra.mxu0 0
        %1604 = vmatprep.subr.bf16.mxu0 0
        %1605 = vmatpush1.bf16.xpose.msra.mxu0 0
        %1606 = vmatprep.subr.bf16.mxu0 0
        %1607 = vmatpush1.bf16.xpose.msra.mxu0 0
        %1608 = vmatprep.subr.bf16.mxu0 0
        %1609 = vmatpush1.bf16.xpose.msra.mxu0 0
        %1610 = vmatprep.subr.bf16.mxu0 0
        %1611 = vmatpush1.bf16.xpose.msra.mxu0 0
        %1612 = vmatprep.subr.bf16.mxu0 0
        %1613 = vmatpush1.bf16.xpose.msra.mxu0 0
        %1614 = vmatprep.subr.bf16.mxu0 0
        %1615 = vmatpush1.bf16.xpose.msra.mxu0 0
        %1616 = vmatprep.subr.bf16.mxu0 0
        %1617 = vmatpush1.bf16.xpose.msra.mxu0 0
        %1618 = vmatprep.subr.bf16.mxu0 0
        %1619 = vmatpush1.bf16.xpose.msra.mxu0 0
        %1620 = vmatprep.subr.bf16.mxu0 0
        %1621 = vmatpush1.bf16.xpose.msra.mxu0 0
        %1622 = vmatprep.subr.bf16.mxu0 0
        %1623 = vmatpush1.bf16.xpose.msra.mxu0 0
        %1624 = vmatprep.subr.bf16.mxu0 0
        %1625 = vmatpush1.bf16.xpose.msra.mxu0 0
        %1626 = vmatprep.subr.bf16.mxu0 0
        %1627 = vmatpush1.bf16.xpose.msra.mxu0 0
        %1628 = vmatprep.mubr.bf16.mxu0 0
        %1629 = vmatmul.mubr.bf16.gmra.mrb[0].mxu0 %v1341
        %v1630 = vpop.f32.mrb[0].mxu0
        %v1631 = vadd.f32 0.0, %v1630
        %v1632 = vpop.f32.mrb[0].mxu0
        %v1633 = vpop.f32.mrb[0].mxu0
        %v1634 = vadd.f32 0.0, %v1633
        %v1635 = vpop.f32.mrb[0].mxu0
        %1636 = vdwg.mxu0
        %v1637 = vsel %vm1420, %v1631, -inf
        %1638 = vmax.xlane.f32.xlu0 %v1637
        %v1639 = vpop.xlane.xlu0 %1638
        %v1640 = vsel %vm1420, %v1634, -inf
        %1641 = vmax.xlane.f32.xlu0 %v1640
        %v1642 = vpop.xlane.xlu0 %1641
        %v1643 = vsub.f32 %v1631, %v1639
        %v1644 = vsub.f32 %v1634, %v1642
        %v1645 = vmul.f32 %v1643, 1.442695
        %v1646 = vpow.pop %v1645
        %v1647 = vmul.f32 %v1644, 1.442695
        %v1648 = vpow.pop %v1647
        %v1649 = vsel %vm1420, %v1646, 0.0
        %1650 = vadd.xlane.f32.xlu0 %v1649
        %v1651 = vpop.xlane.xlu0 %1650
        %v1652 = vsel %vm1420, %v1648, 0.0
        %1653 = vadd.xlane.f32.xlu0 %v1652
        %v1654 = vpop.xlane.xlu0 %1653
        %v1655 = vrcp.pop %v1651
        %v1656 = vrcp.pop %v1654
        %v1657 = vmul.f32 %v1646, %v1655
        %v1658 = vmul.f32 %v1648, %v1656
        %v1659 = vpack.c.bf16 %v1658, %v1657
        %v1661 = vsel %vm1420, %v1659, 0
        %1663 = vmatprep.subr.bf16.mxu0 0
        %1664 = vmatpush1.bf16.msra.mxu0 %v1367
        %1665 = vmatprep.subr.bf16.mxu0 0
        %1666 = vmatpush1.bf16.msra.mxu0 %v1369
        %1667 = vmatprep.subr.bf16.mxu0 0
        %1668 = vmatpush1.bf16.msra.mxu0 0
        %1669 = vmatprep.subr.bf16.mxu0 0
        %1670 = vmatpush1.bf16.msra.mxu0 0
        %1671 = vmatprep.subr.bf16.mxu0 0
        %1672 = vmatpush1.bf16.msra.mxu0 0
        %1673 = vmatprep.subr.bf16.mxu0 0
        %1674 = vmatpush1.bf16.msra.mxu0 0
        %1675 = vmatprep.subr.bf16.mxu0 0
        %1676 = vmatpush1.bf16.msra.mxu0 0
        %1677 = vmatprep.subr.bf16.mxu0 0
        %1678 = vmatpush1.bf16.msra.mxu0 0
        %1679 = vmatprep.subr.bf16.mxu0 0
        %1680 = vmatpush1.bf16.msra.mxu0 0
        %1681 = vmatprep.subr.bf16.mxu0 0
        %1682 = vmatpush1.bf16.msra.mxu0 0
        %1683 = vmatprep.subr.bf16.mxu0 0
        %1684 = vmatpush1.bf16.msra.mxu0 0
        %1685 = vmatprep.subr.bf16.mxu0 0
        %1686 = vmatpush1.bf16.msra.mxu0 0
        %1687 = vmatprep.subr.bf16.mxu0 0
        %1688 = vmatpush1.bf16.msra.mxu0 0
        %1689 = vmatprep.subr.bf16.mxu0 0
        %1690 = vmatpush1.bf16.msra.mxu0 0
        %1691 = vmatprep.subr.bf16.mxu0 0
        %1692 = vmatpush1.bf16.msra.mxu0 0
        %1693 = vmatprep.subr.bf16.mxu0 0
        %1694 = vmatpush1.bf16.msra.mxu0 0
        %1695 = vmatprep.mubr.bf16.mxu0 0
        %1696 = vmatmul.mubr.bf16.gmra.mrb[0].mxu0 %v1661
        %v1697 = vpop.f32.mrb[0].mxu0
        %v1698 = vadd.f32 0.0, %v1697
        %v1699 = vpop.f32.mrb[0].mxu0
        %v1700 = vpop.f32.mrb[0].mxu0
        %v1701 = vadd.f32 0.0, %v1700
        %v1702 = vpop.f32.mrb[0].mxu0
        %1703 = vdwg.mxu0
        %1704 = vmatprep.subr.bf16.mxu0 0
        %1705 = vmatpush1.bf16.xpose.msra.mxu0 %v1352
        %1706 = vmatprep.subr.bf16.mxu0 0
        %1707 = vmatpush1.bf16.xpose.msra.mxu0 %v1354
        %1708 = vmatprep.subr.bf16.mxu0 0
        %1709 = vmatpush1.bf16.xpose.msra.mxu0 0
        %1710 = vmatprep.subr.bf16.mxu0 0
        %1711 = vmatpush1.bf16.xpose.msra.mxu0 0
        %1712 = vmatprep.subr.bf16.mxu0 0
        %1713 = vmatpush1.bf16.xpose.msra.mxu0 0
        %1714 = vmatprep.subr.bf16.mxu0 0
        %1715 = vmatpush1.bf16.xpose.msra.mxu0 0
        %1716 = vmatprep.subr.bf16.mxu0 0
        %1717 = vmatpush1.bf16.xpose.msra.mxu0 0
        %1718 = vmatprep.subr.bf16.mxu0 0
        %1719 = vmatpush1.bf16.xpose.msra.mxu0 0
        %1720 = vmatprep.subr.bf16.mxu0 0
        %1721 = vmatpush1.bf16.xpose.msra.mxu0 0
        %1722 = vmatprep.subr.bf16.mxu0 0
        %1723 = vmatpush1.bf16.xpose.msra.mxu0 0
        %1724 = vmatprep.subr.bf16.mxu0 0
        %1725 = vmatpush1.bf16.xpose.msra.mxu0 0
        %1726 = vmatprep.subr.bf16.mxu0 0
        %1727 = vmatpush1.bf16.xpose.msra.mxu0 0
        %1728 = vmatprep.subr.bf16.mxu0 0
        %1729 = vmatpush1.bf16.xpose.msra.mxu0 0
        %1730 = vmatprep.subr.bf16.mxu0 0
        %1731 = vmatpush1.bf16.xpose.msra.mxu0 0
        %1732 = vmatprep.subr.bf16.mxu0 0
        %1733 = vmatpush1.bf16.xpose.msra.mxu0 0
        %1734 = vmatprep.subr.bf16.mxu0 0
        %1735 = vmatpush1.bf16.xpose.msra.mxu0 0
        %1736 = vmatprep.mubr.bf16.mxu0 0
        %1737 = vmatmul.mubr.bf16.gmra.mrb[0].mxu0 %v1342
        %v1738 = vpop.f32.mrb[0].mxu0
        %v1739 = vadd.f32 0.0, %v1738
        %v1740 = vpop.f32.mrb[0].mxu0
        %v1741 = vpop.f32.mrb[0].mxu0
        %v1742 = vadd.f32 0.0, %v1741
        %v1743 = vpop.f32.mrb[0].mxu0
        %1744 = vdwg.mxu0
        %v1745 = vsel %vm1420, %v1739, -inf
        %1746 = vmax.xlane.f32.xlu0 %v1745
        %v1747 = vpop.xlane.xlu0 %1746
        %v1748 = vsel %vm1420, %v1742, -inf
        %1749 = vmax.xlane.f32.xlu0 %v1748
        %v1750 = vpop.xlane.xlu0 %1749
        %v1751 = vsub.f32 %v1739, %v1747
        %v1752 = vsub.f32 %v1742, %v1750
        %v1753 = vmul.f32 %v1751, 1.442695
        %v1754 = vpow.pop %v1753
        %v1755 = vmul.f32 %v1752, 1.442695
        %v1756 = vpow.pop %v1755
        %v1757 = vsel %vm1420, %v1754, 0.0
        %1758 = vadd.xlane.f32.xlu0 %v1757
        %v1759 = vpop.xlane.xlu0 %1758
        %v1760 = vsel %vm1420, %v1756, 0.0
        %1761 = vadd.xlane.f32.xlu0 %v1760
        %v1762 = vpop.xlane.xlu0 %1761
        %v1763 = vrcp.pop %v1759
        %v1764 = vrcp.pop %v1762
        %v1765 = vmul.f32 %v1754, %v1763
        %v1766 = vmul.f32 %v1756, %v1764
        %v1767 = vpack.c.bf16 %v1766, %v1765
        %v1769 = vsel %vm1420, %v1767, 0
        %1771 = vmatprep.subr.bf16.mxu0 0
        %1772 = vmatpush1.bf16.msra.mxu0 %v1368
        %1773 = vmatprep.subr.bf16.mxu0 0
        %1774 = vmatpush1.bf16.msra.mxu0 %v1370
        %1775 = vmatprep.subr.bf16.mxu0 0
        %1776 = vmatpush1.bf16.msra.mxu0 0
        %1777 = vmatprep.subr.bf16.mxu0 0
        %1778 = vmatpush1.bf16.msra.mxu0 0
        %1779 = vmatprep.subr.bf16.mxu0 0
        %1780 = vmatpush1.bf16.msra.mxu0 0
        %1781 = vmatprep.subr.bf16.mxu0 0
        %1782 = vmatpush1.bf16.msra.mxu0 0
        %1783 = vmatprep.subr.bf16.mxu0 0
        %1784 = vmatpush1.bf16.msra.mxu0 0
        %1785 = vmatprep.subr.bf16.mxu0 0
        %1786 = vmatpush1.bf16.msra.mxu0 0
        %1787 = vmatprep.subr.bf16.mxu0 0
        %1788 = vmatpush1.bf16.msra.mxu0 0
        %1789 = vmatprep.subr.bf16.mxu0 0
        %1790 = vmatpush1.bf16.msra.mxu0 0
        %1791 = vmatprep.subr.bf16.mxu0 0
        %1792 = vmatpush1.bf16.msra.mxu0 0
        %1793 = vmatprep.subr.bf16.mxu0 0
        %1794 = vmatpush1.bf16.msra.mxu0 0
        %1795 = vmatprep.subr.bf16.mxu0 0
        %1796 = vmatpush1.bf16.msra.mxu0 0
        %1797 = vmatprep.subr.bf16.mxu0 0
        %1798 = vmatpush1.bf16.msra.mxu0 0
        %1799 = vmatprep.subr.bf16.mxu0 0
        %1800 = vmatpush1.bf16.msra.mxu0 0
        %1801 = vmatprep.subr.bf16.mxu0 0
        %1802 = vmatpush1.bf16.msra.mxu0 0
        %1803 = vmatprep.mubr.bf16.mxu0 0
        %1804 = vmatmul.mubr.bf16.gmra.mrb[0].mxu0 %v1769
        %v1805 = vpop.f32.mrb[0].mxu0
        %v1806 = vadd.f32 0.0, %v1805
        %v1807 = vpop.f32.mrb[0].mxu0
        %v1808 = vpop.f32.mrb[0].mxu0
        %v1809 = vadd.f32 0.0, %v1808
        %v1810 = vpop.f32.mrb[0].mxu0
        %1811 = vdwg.mxu0
        %1812 = vmatprep.subr.bf16.mxu0 0
        %1813 = vmatpush1.bf16.xpose.msra.mxu0 %v1355
        %1814 = vmatprep.subr.bf16.mxu0 0
        %1815 = vmatpush1.bf16.xpose.msra.mxu0 %v1357
        %1816 = vmatprep.subr.bf16.mxu0 0
        %1817 = vmatpush1.bf16.xpose.msra.mxu0 0
        %1818 = vmatprep.subr.bf16.mxu0 0
        %1819 = vmatpush1.bf16.xpose.msra.mxu0 0
        %1820 = vmatprep.subr.bf16.mxu0 0
        %1821 = vmatpush1.bf16.xpose.msra.mxu0 0
        %1822 = vmatprep.subr.bf16.mxu0 0
        %1823 = vmatpush1.bf16.xpose.msra.mxu0 0
        %1824 = vmatprep.subr.bf16.mxu0 0
        %1825 = vmatpush1.bf16.xpose.msra.mxu0 0
        %1826 = vmatprep.subr.bf16.mxu0 0
        %1827 = vmatpush1.bf16.xpose.msra.mxu0 0
        %1828 = vmatprep.subr.bf16.mxu0 0
        %1829 = vmatpush1.bf16.xpose.msra.mxu0 0
        %1830 = vmatprep.subr.bf16.mxu0 0
        %1831 = vmatpush1.bf16.xpose.msra.mxu0 0
        %1832 = vmatprep.subr.bf16.mxu0 0
        %1833 = vmatpush1.bf16.xpose.msra.mxu0 0
        %1834 = vmatprep.subr.bf16.mxu0 0
        %1835 = vmatpush1.bf16.xpose.msra.mxu0 0
        %1836 = vmatprep.subr.bf16.mxu0 0
        %1837 = vmatpush1.bf16.xpose.msra.mxu0 0
        %1838 = vmatprep.subr.bf16.mxu0 0
        %1839 = vmatpush1.bf16.xpose.msra.mxu0 0
        %1840 = vmatprep.subr.bf16.mxu0 0
        %1841 = vmatpush1.bf16.xpose.msra.mxu0 0
        %1842 = vmatprep.subr.bf16.mxu0 0
        %1843 = vmatpush1.bf16.xpose.msra.mxu0 0
        %1844 = vmatprep.mubr.bf16.mxu0 0
        %1845 = vmatmul.mubr.bf16.gmra.mrb[0].mxu0 %v1343
        %v1846 = vpop.f32.mrb[0].mxu0
        %v1847 = vadd.f32 0.0, %v1846
        %v1848 = vpop.f32.mrb[0].mxu0
        %v1849 = vpop.f32.mrb[0].mxu0
        %v1850 = vadd.f32 0.0, %v1849
        %v1851 = vpop.f32.mrb[0].mxu0
        %1852 = vdwg.mxu0
        %v1853 = vsel %vm1420, %v1847, -inf
        %1854 = vmax.xlane.f32.xlu0 %v1853
        %v1855 = vpop.xlane.xlu0 %1854
        %v1856 = vsel %vm1420, %v1850, -inf
        %1857 = vmax.xlane.f32.xlu0 %v1856
        %v1858 = vpop.xlane.xlu0 %1857
        %v1859 = vsub.f32 %v1847, %v1855
        %v1860 = vsub.f32 %v1850, %v1858
        %v1861 = vmul.f32 %v1859, 1.442695
        %v1862 = vpow.pop %v1861
        %v1863 = vmul.f32 %v1860, 1.442695
        %v1864 = vpow.pop %v1863
        %v1865 = vsel %vm1420, %v1862, 0.0
        %1866 = vadd.xlane.f32.xlu0 %v1865
        %v1867 = vpop.xlane.xlu0 %1866
        %v1868 = vsel %vm1420, %v1864, 0.0
        %1869 = vadd.xlane.f32.xlu0 %v1868
        %v1870 = vpop.xlane.xlu0 %1869
        %v1871 = vrcp.pop %v1867
        %v1872 = vrcp.pop %v1870
        %v1873 = vmul.f32 %v1862, %v1871
        %v1874 = vmul.f32 %v1864, %v1872
        %v1875 = vpack.c.bf16 %v1874, %v1873
        %v1877 = vsel %vm1420, %v1875, 0
        %1879 = vmatprep.subr.bf16.mxu0 0
        %1880 = vmatpush1.bf16.msra.mxu0 %v1371
        %1881 = vmatprep.subr.bf16.mxu0 0
        %1882 = vmatpush1.bf16.msra.mxu0 %v1373
        %1883 = vmatprep.subr.bf16.mxu0 0
        %1884 = vmatpush1.bf16.msra.mxu0 0
        %1885 = vmatprep.subr.bf16.mxu0 0
        %1886 = vmatpush1.bf16.msra.mxu0 0
        %1887 = vmatprep.subr.bf16.mxu0 0
        %1888 = vmatpush1.bf16.msra.mxu0 0
        %1889 = vmatprep.subr.bf16.mxu0 0
        %1890 = vmatpush1.bf16.msra.mxu0 0
        %1891 = vmatprep.subr.bf16.mxu0 0
        %1892 = vmatpush1.bf16.msra.mxu0 0
        %1893 = vmatprep.subr.bf16.mxu0 0
        %1894 = vmatpush1.bf16.msra.mxu0 0
        %1895 = vmatprep.subr.bf16.mxu0 0
        %1896 = vmatpush1.bf16.msra.mxu0 0
        %1897 = vmatprep.subr.bf16.mxu0 0
        %1898 = vmatpush1.bf16.msra.mxu0 0
        %1899 = vmatprep.subr.bf16.mxu0 0
        %1900 = vmatpush1.bf16.msra.mxu0 0
        %1901 = vmatprep.subr.bf16.mxu0 0
        %1902 = vmatpush1.bf16.msra.mxu0 0
        %1903 = vmatprep.subr.bf16.mxu0 0
        %1904 = vmatpush1.bf16.msra.mxu0 0
        %1905 = vmatprep.subr.bf16.mxu0 0
        %1906 = vmatpush1.bf16.msra.mxu0 0
        %1907 = vmatprep.subr.bf16.mxu0 0
        %1908 = vmatpush1.bf16.msra.mxu0 0
        %1909 = vmatprep.subr.bf16.mxu0 0
        %1910 = vmatpush1.bf16.msra.mxu0 0
        %1911 = vmatprep.mubr.bf16.mxu0 0
        %1912 = vmatmul.mubr.bf16.gmra.mrb[0].mxu0 %v1877
        %v1913 = vpop.f32.mrb[0].mxu0
        %v1914 = vadd.f32 0.0, %v1913
        %v1915 = vpop.f32.mrb[0].mxu0
        %v1916 = vpop.f32.mrb[0].mxu0
        %v1917 = vadd.f32 0.0, %v1916
        %v1918 = vpop.f32.mrb[0].mxu0
        %1919 = vdwg.mxu0
        %1920 = vmatprep.subr.bf16.mxu0 0
        %1921 = vmatpush1.bf16.xpose.msra.mxu0 %v1356
        %1922 = vmatprep.subr.bf16.mxu0 0
        %1923 = vmatpush1.bf16.xpose.msra.mxu0 %v1358
        %1924 = vmatprep.subr.bf16.mxu0 0
        %1925 = vmatpush1.bf16.xpose.msra.mxu0 0
        %1926 = vmatprep.subr.bf16.mxu0 0
        %1927 = vmatpush1.bf16.xpose.msra.mxu0 0
        %1928 = vmatprep.subr.bf16.mxu0 0
        %1929 = vmatpush1.bf16.xpose.msra.mxu0 0
        %1930 = vmatprep.subr.bf16.mxu0 0
        %1931 = vmatpush1.bf16.xpose.msra.mxu0 0
        %1932 = vmatprep.subr.bf16.mxu0 0
        %1933 = vmatpush1.bf16.xpose.msra.mxu0 0
        %1934 = vmatprep.subr.bf16.mxu0 0
        %1935 = vmatpush1.bf16.xpose.msra.mxu0 0
        %1936 = vmatprep.subr.bf16.mxu0 0
        %1937 = vmatpush1.bf16.xpose.msra.mxu0 0
        %1938 = vmatprep.subr.bf16.mxu0 0
        %1939 = vmatpush1.bf16.xpose.msra.mxu0 0
        %1940 = vmatprep.subr.bf16.mxu0 0
        %1941 = vmatpush1.bf16.xpose.msra.mxu0 0
        %1942 = vmatprep.subr.bf16.mxu0 0
        %1943 = vmatpush1.bf16.xpose.msra.mxu0 0
        %1944 = vmatprep.subr.bf16.mxu0 0
        %1945 = vmatpush1.bf16.xpose.msra.mxu0 0
        %1946 = vmatprep.subr.bf16.mxu0 0
        %1947 = vmatpush1.bf16.xpose.msra.mxu0 0
        %1948 = vmatprep.subr.bf16.mxu0 0
        %1949 = vmatpush1.bf16.xpose.msra.mxu0 0
        %1950 = vmatprep.subr.bf16.mxu0 0
        %1951 = vmatpush1.bf16.xpose.msra.mxu0 0
        %1952 = vmatprep.mubr.bf16.mxu0 0
        %1953 = vmatmul.mubr.bf16.gmra.mrb[0].mxu0 %v1344
        %v1954 = vpop.f32.mrb[0].mxu0
        %v1955 = vadd.f32 0.0, %v1954
        %v1956 = vpop.f32.mrb[0].mxu0
        %v1957 = vpop.f32.mrb[0].mxu0
        %v1958 = vadd.f32 0.0, %v1957
        %v1959 = vpop.f32.mrb[0].mxu0
        %1960 = vdwg.mxu0
        %v1961 = vsel %vm1420, %v1955, -inf
        %1962 = vmax.xlane.f32.xlu0 %v1961
        %v1963 = vpop.xlane.xlu0 %1962
        %v1964 = vsel %vm1420, %v1958, -inf
        %1965 = vmax.xlane.f32.xlu0 %v1964
        %v1966 = vpop.xlane.xlu0 %1965
        %v1967 = vsub.f32 %v1955, %v1963
        %v1968 = vsub.f32 %v1958, %v1966
        %v1969 = vmul.f32 %v1967, 1.442695
        %v1970 = vpow.pop %v1969
        %v1971 = vmul.f32 %v1968, 1.442695
        %v1972 = vpow.pop %v1971
        %v1973 = vsel %vm1420, %v1970, 0.0
        %1974 = vadd.xlane.f32.xlu0 %v1973
        %v1975 = vpop.xlane.xlu0 %1974
        %v1976 = vsel %vm1420, %v1972, 0.0
        %1977 = vadd.xlane.f32.xlu0 %v1976
        %v1978 = vpop.xlane.xlu0 %1977
        %v1979 = vrcp.pop %v1975
        %v1980 = vrcp.pop %v1978
        %v1981 = vmul.f32 %v1970, %v1979
        %v1982 = vmul.f32 %v1972, %v1980
        %v1983 = vpack.c.bf16 %v1982, %v1981
        %v1985 = vsel %vm1420, %v1983, 0
        %1987 = vmatprep.subr.bf16.mxu0 0
        %1988 = vmatpush1.bf16.msra.mxu0 %v1372
        %1989 = vmatprep.subr.bf16.mxu0 0
        %1990 = vmatpush1.bf16.msra.mxu0 %v1374
        %1991 = vmatprep.subr.bf16.mxu0 0
        %1992 = vmatpush1.bf16.msra.mxu0 0
        %1993 = vmatprep.subr.bf16.mxu0 0
        %1994 = vmatpush1.bf16.msra.mxu0 0
        %1995 = vmatprep.subr.bf16.mxu0 0
        %1996 = vmatpush1.bf16.msra.mxu0 0
        %1997 = vmatprep.subr.bf16.mxu0 0
        %1998 = vmatpush1.bf16.msra.mxu0 0
        %1999 = vmatprep.subr.bf16.mxu0 0
        %2000 = vmatpush1.bf16.msra.mxu0 0
        %2001 = vmatprep.subr.bf16.mxu0 0
        %2002 = vmatpush1.bf16.msra.mxu0 0
        %2003 = vmatprep.subr.bf16.mxu0 0
        %2004 = vmatpush1.bf16.msra.mxu0 0
        %2005 = vmatprep.subr.bf16.mxu0 0
        %2006 = vmatpush1.bf16.msra.mxu0 0
        %2007 = vmatprep.subr.bf16.mxu0 0
        %2008 = vmatpush1.bf16.msra.mxu0 0
        %2009 = vmatprep.subr.bf16.mxu0 0
        %2010 = vmatpush1.bf16.msra.mxu0 0
        %2011 = vmatprep.subr.bf16.mxu0 0
        %2012 = vmatpush1.bf16.msra.mxu0 0
        %2013 = vmatprep.subr.bf16.mxu0 0
        %2014 = vmatpush1.bf16.msra.mxu0 0
        %2015 = vmatprep.subr.bf16.mxu0 0
        %2016 = vmatpush1.bf16.msra.mxu0 0
        %2017 = vmatprep.subr.bf16.mxu0 0
        %2018 = vmatpush1.bf16.msra.mxu0 0
        %2019 = vmatprep.mubr.bf16.mxu0 0
        %2020 = vmatmul.mubr.bf16.gmra.mrb[0].mxu0 %v1985
        %v2021 = vpop.f32.mrb[0].mxu0
        %v2022 = vadd.f32 0.0, %v2021
        %v2023 = vpop.f32.mrb[0].mxu0
        %v2024 = vpop.f32.mrb[0].mxu0
        %v2025 = vadd.f32 0.0, %v2024
        %v2026 = vpop.f32.mrb[0].mxu0
        %2027 = vdwg.mxu0
        %2028 = vmatprep.subr.bf16.mxu0 0
        %2029 = vmatpush1.bf16.xpose.msra.mxu0 %v1359
        %2030 = vmatprep.subr.bf16.mxu0 0
        %2031 = vmatpush1.bf16.xpose.msra.mxu0 %v1361
        %2032 = vmatprep.subr.bf16.mxu0 0
        %2033 = vmatpush1.bf16.xpose.msra.mxu0 0
        %2034 = vmatprep.subr.bf16.mxu0 0
        %2035 = vmatpush1.bf16.xpose.msra.mxu0 0
        %2036 = vmatprep.subr.bf16.mxu0 0
        %2037 = vmatpush1.bf16.xpose.msra.mxu0 0
        %2038 = vmatprep.subr.bf16.mxu0 0
        %2039 = vmatpush1.bf16.xpose.msra.mxu0 0
        %2040 = vmatprep.subr.bf16.mxu0 0
        %2041 = vmatpush1.bf16.xpose.msra.mxu0 0
        %2042 = vmatprep.subr.bf16.mxu0 0
        %2043 = vmatpush1.bf16.xpose.msra.mxu0 0
        %2044 = vmatprep.subr.bf16.mxu0 0
        %2045 = vmatpush1.bf16.xpose.msra.mxu0 0
        %2046 = vmatprep.subr.bf16.mxu0 0
        %2047 = vmatpush1.bf16.xpose.msra.mxu0 0
        %2048 = vmatprep.subr.bf16.mxu0 0
        %2049 = vmatpush1.bf16.xpose.msra.mxu0 0
        %2050 = vmatprep.subr.bf16.mxu0 0
        %2051 = vmatpush1.bf16.xpose.msra.mxu0 0
        %2052 = vmatprep.subr.bf16.mxu0 0
        %2053 = vmatpush1.bf16.xpose.msra.mxu0 0
        %2054 = vmatprep.subr.bf16.mxu0 0
        %2055 = vmatpush1.bf16.xpose.msra.mxu0 0
        %2056 = vmatprep.subr.bf16.mxu0 0
        %2057 = vmatpush1.bf16.xpose.msra.mxu0 0
        %2058 = vmatprep.subr.bf16.mxu0 0
        %2059 = vmatpush1.bf16.xpose.msra.mxu0 0
        %2060 = vmatprep.mubr.bf16.mxu0 0
        %2061 = vmatmul.mubr.bf16.gmra.mrb[0].mxu0 %v1345
        %v2062 = vpop.f32.mrb[0].mxu0
        %v2063 = vadd.f32 0.0, %v2062
        %v2064 = vpop.f32.mrb[0].mxu0
        %v2065 = vpop.f32.mrb[0].mxu0
        %v2066 = vadd.f32 0.0, %v2065
        %v2067 = vpop.f32.mrb[0].mxu0
        %2068 = vdwg.mxu0
        %v2069 = vsel %vm1420, %v2063, -inf
        %2070 = vmax.xlane.f32.xlu0 %v2069
        %v2071 = vpop.xlane.xlu0 %2070
        %v2072 = vsel %vm1420, %v2066, -inf
        %2073 = vmax.xlane.f32.xlu0 %v2072
        %v2074 = vpop.xlane.xlu0 %2073
        %v2075 = vsub.f32 %v2063, %v2071
        %v2076 = vsub.f32 %v2066, %v2074
        %v2077 = vmul.f32 %v2075, 1.442695
        %v2078 = vpow.pop %v2077
        %v2079 = vmul.f32 %v2076, 1.442695
        %v2080 = vpow.pop %v2079
        %v2081 = vsel %vm1420, %v2078, 0.0
        %2082 = vadd.xlane.f32.xlu0 %v2081
        %v2083 = vpop.xlane.xlu0 %2082
        %v2084 = vsel %vm1420, %v2080, 0.0
        %2085 = vadd.xlane.f32.xlu0 %v2084
        %v2086 = vpop.xlane.xlu0 %2085
        %v2087 = vrcp.pop %v2083
        %v2088 = vrcp.pop %v2086
        %v2089 = vmul.f32 %v2078, %v2087
        %v2090 = vmul.f32 %v2080, %v2088
        %v2091 = vpack.c.bf16 %v2090, %v2089
        %v2093 = vsel %vm1420, %v2091, 0
        %2095 = vmatprep.subr.bf16.mxu0 0
        %2096 = vmatpush1.bf16.msra.mxu0 %v1375
        %2097 = vmatprep.subr.bf16.mxu0 0
        %2098 = vmatpush1.bf16.msra.mxu0 %v1377
        %2099 = vmatprep.subr.bf16.mxu0 0
        %2100 = vmatpush1.bf16.msra.mxu0 0
        %2101 = vmatprep.subr.bf16.mxu0 0
        %2102 = vmatpush1.bf16.msra.mxu0 0
        %2103 = vmatprep.subr.bf16.mxu0 0
        %2104 = vmatpush1.bf16.msra.mxu0 0
        %2105 = vmatprep.subr.bf16.mxu0 0
        %2106 = vmatpush1.bf16.msra.mxu0 0
        %2107 = vmatprep.subr.bf16.mxu0 0
        %2108 = vmatpush1.bf16.msra.mxu0 0
        %2109 = vmatprep.subr.bf16.mxu0 0
        %2110 = vmatpush1.bf16.msra.mxu0 0
        %2111 = vmatprep.subr.bf16.mxu0 0
        %2112 = vmatpush1.bf16.msra.mxu0 0
        %2113 = vmatprep.subr.bf16.mxu0 0
        %2114 = vmatpush1.bf16.msra.mxu0 0
        %2115 = vmatprep.subr.bf16.mxu0 0
        %2116 = vmatpush1.bf16.msra.mxu0 0
        %2117 = vmatprep.subr.bf16.mxu0 0
        %2118 = vmatpush1.bf16.msra.mxu0 0
        %2119 = vmatprep.subr.bf16.mxu0 0
        %2120 = vmatpush1.bf16.msra.mxu0 0
        %2121 = vmatprep.subr.bf16.mxu0 0
        %2122 = vmatpush1.bf16.msra.mxu0 0
        %2123 = vmatprep.subr.bf16.mxu0 0
        %2124 = vmatpush1.bf16.msra.mxu0 0
        %2125 = vmatprep.subr.bf16.mxu0 0
        %2126 = vmatpush1.bf16.msra.mxu0 0
        %2127 = vmatprep.mubr.bf16.mxu0 0
        %2128 = vmatmul.mubr.bf16.gmra.mrb[0].mxu0 %v2093
        %v2129 = vpop.f32.mrb[0].mxu0
        %v2130 = vadd.f32 0.0, %v2129
        %v2131 = vpop.f32.mrb[0].mxu0
        %v2132 = vpop.f32.mrb[0].mxu0
        %v2133 = vadd.f32 0.0, %v2132
        %v2134 = vpop.f32.mrb[0].mxu0
        %2135 = vdwg.mxu0
        %2136 = vmatprep.subr.bf16.mxu0 0
        %2137 = vmatpush1.bf16.xpose.msra.mxu0 %v1360
        %2138 = vmatprep.subr.bf16.mxu0 0
        %2139 = vmatpush1.bf16.xpose.msra.mxu0 %v1362
        %2140 = vmatprep.subr.bf16.mxu0 0
        %2141 = vmatpush1.bf16.xpose.msra.mxu0 0
        %2142 = vmatprep.subr.bf16.mxu0 0
        %2143 = vmatpush1.bf16.xpose.msra.mxu0 0
        %2144 = vmatprep.subr.bf16.mxu0 0
        %2145 = vmatpush1.bf16.xpose.msra.mxu0 0
        %2146 = vmatprep.subr.bf16.mxu0 0
        %2147 = vmatpush1.bf16.xpose.msra.mxu0 0
        %2148 = vmatprep.subr.bf16.mxu0 0
        %2149 = vmatpush1.bf16.xpose.msra.mxu0 0
        %2150 = vmatprep.subr.bf16.mxu0 0
        %2151 = vmatpush1.bf16.xpose.msra.mxu0 0
        %2152 = vmatprep.subr.bf16.mxu0 0
        %2153 = vmatpush1.bf16.xpose.msra.mxu0 0
        %2154 = vmatprep.subr.bf16.mxu0 0
        %2155 = vmatpush1.bf16.xpose.msra.mxu0 0
        %2156 = vmatprep.subr.bf16.mxu0 0
        %2157 = vmatpush1.bf16.xpose.msra.mxu0 0
        %2158 = vmatprep.subr.bf16.mxu0 0
        %2159 = vmatpush1.bf16.xpose.msra.mxu0 0
        %2160 = vmatprep.subr.bf16.mxu0 0
        %2161 = vmatpush1.bf16.xpose.msra.mxu0 0
        %2162 = vmatprep.subr.bf16.mxu0 0
        %2163 = vmatpush1.bf16.xpose.msra.mxu0 0
        %2164 = vmatprep.subr.bf16.mxu0 0
        %2165 = vmatpush1.bf16.xpose.msra.mxu0 0
        %2166 = vmatprep.subr.bf16.mxu0 0
        %2167 = vmatpush1.bf16.xpose.msra.mxu0 0
        %2168 = vmatprep.mubr.bf16.mxu0 0
        %2169 = vmatmul.mubr.bf16.gmra.mrb[0].mxu0 %v1346
        %v2170 = vpop.f32.mrb[0].mxu0
        %v2171 = vadd.f32 0.0, %v2170
        %v2172 = vpop.f32.mrb[0].mxu0
        %v2173 = vpop.f32.mrb[0].mxu0
        %v2174 = vadd.f32 0.0, %v2173
        %v2175 = vpop.f32.mrb[0].mxu0
        %2176 = vdwg.mxu0
        %v2177 = vsel %vm1420, %v2171, -inf
        %2178 = vmax.xlane.f32.xlu0 %v2177
        %v2179 = vpop.xlane.xlu0 %2178
        %v2180 = vsel %vm1420, %v2174, -inf
        %2181 = vmax.xlane.f32.xlu0 %v2180
        %v2182 = vpop.xlane.xlu0 %2181
        %v2183 = vsub.f32 %v2171, %v2179
        %v2184 = vsub.f32 %v2174, %v2182
        %v2185 = vmul.f32 %v2183, 1.442695
        %v2186 = vpow.pop %v2185
        %v2187 = vmul.f32 %v2184, 1.442695
        %v2188 = vpow.pop %v2187
        %v2189 = vsel %vm1420, %v2186, 0.0
        %2190 = vadd.xlane.f32.xlu0 %v2189
        %v2191 = vpop.xlane.xlu0 %2190
        %v2192 = vsel %vm1420, %v2188, 0.0
        %2193 = vadd.xlane.f32.xlu0 %v2192
        %v2194 = vpop.xlane.xlu0 %2193
        %v2195 = vrcp.pop %v2191
        %v2196 = vrcp.pop %v2194
        %v2197 = vmul.f32 %v2186, %v2195
        %v2198 = vmul.f32 %v2188, %v2196
        %v2199 = vpack.c.bf16 %v2198, %v2197
        %v2201 = vsel %vm1420, %v2199, 0
        %2203 = vmatprep.subr.bf16.mxu0 0
        %2204 = vmatpush1.bf16.msra.mxu0 %v1376
        %2205 = vmatprep.subr.bf16.mxu0 0
        %2206 = vmatpush1.bf16.msra.mxu0 %v1378
        %2207 = vmatprep.subr.bf16.mxu0 0
        %2208 = vmatpush1.bf16.msra.mxu0 0
        %2209 = vmatprep.subr.bf16.mxu0 0
        %2210 = vmatpush1.bf16.msra.mxu0 0
        %2211 = vmatprep.subr.bf16.mxu0 0
        %2212 = vmatpush1.bf16.msra.mxu0 0
        %2213 = vmatprep.subr.bf16.mxu0 0
        %2214 = vmatpush1.bf16.msra.mxu0 0
        %2215 = vmatprep.subr.bf16.mxu0 0
        %2216 = vmatpush1.bf16.msra.mxu0 0
        %2217 = vmatprep.subr.bf16.mxu0 0
        %2218 = vmatpush1.bf16.msra.mxu0 0
        %2219 = vmatprep.subr.bf16.mxu0 0
        %2220 = vmatpush1.bf16.msra.mxu0 0
        %2221 = vmatprep.subr.bf16.mxu0 0
        %2222 = vmatpush1.bf16.msra.mxu0 0
        %2223 = vmatprep.subr.bf16.mxu0 0
        %2224 = vmatpush1.bf16.msra.mxu0 0
        %2225 = vmatprep.subr.bf16.mxu0 0
        %2226 = vmatpush1.bf16.msra.mxu0 0
        %2227 = vmatprep.subr.bf16.mxu0 0
        %2228 = vmatpush1.bf16.msra.mxu0 0
        %2229 = vmatprep.subr.bf16.mxu0 0
        %2230 = vmatpush1.bf16.msra.mxu0 0
        %2231 = vmatprep.subr.bf16.mxu0 0
        %2232 = vmatpush1.bf16.msra.mxu0 0
        %2233 = vmatprep.subr.bf16.mxu0 0
        %2234 = vmatpush1.bf16.msra.mxu0 0
        %2235 = vmatprep.mubr.bf16.mxu0 0
        %2236 = vmatmul.mubr.bf16.gmra.mrb[0].mxu0 %v2201
        %v2237 = vpop.f32.mrb[0].mxu0
        %v2238 = vadd.f32 0.0, %v2237
        %v2239 = vpop.f32.mrb[0].mxu0
        %v2240 = vpop.f32.mrb[0].mxu0
        %v2241 = vadd.f32 0.0, %v2240
        %v2242 = vpop.f32.mrb[0].mxu0
        %2243 = vdwg.mxu0
        %v2244 = vpack.c.bf16 %v1485, %v1482
        %v2245 = vpack.c.bf16 %v1593, %v1590
        %v2246 = vpack.c.bf16 %v1701, %v1698
        %v2247 = vpack.c.bf16 %v1809, %v1806
        %v2248 = vpack.c.bf16 %v1917, %v1914
        %v2249 = vpack.c.bf16 %v2025, %v2022
        %v2250 = vpack.c.bf16 %v2133, %v2130
        %v2251 = vpack.c.bf16 %v2241, %v2238
        %v2252 = vld [vmem:[#allocation11] sm:$0xf]
        %v2253 = vld [vmem:[#allocation11 + $0x4] sm:$0xf]
        %v2254 = vld [vmem:[#allocation11 + $0x8] sm:$0xf]
        %v2255 = vld [vmem:[#allocation11 + $0xc] sm:$0xf]
        %v2256 = vld [vmem:[#allocation11 + $0x10] sm:$0xf]
        %v2257 = vld [vmem:[#allocation11 + $0x14] sm:$0xf]
        %v2258 = vld [vmem:[#allocation11 + $0x18] sm:$0xf]
        %v2259 = vld [vmem:[#allocation11 + $0x1c] sm:$0xf]
        %v2260 = vld [vmem:[#allocation11 + $0x20] sm:$0xf]
        %v2261 = vld [vmem:[#allocation11 + $0x24] sm:$0xf]
        %v2262 = vld [vmem:[#allocation11 + $0x28] sm:$0xf]
        %v2263 = vld [vmem:[#allocation11 + $0x2c] sm:$0xf]
        %v2264 = vld [vmem:[#allocation11 + $0x30] sm:$0xf]
        %v2265 = vld [vmem:[#allocation11 + $0x34] sm:$0xf]
        %v2266 = vld [vmem:[#allocation11 + $0x38] sm:$0xf]
        %v2267 = vld [vmem:[#allocation11 + $0x3c] sm:$0xf]
        %v2268 = vld [vmem:[#allocation11 + $0x40] sm:$0xf]
        %v2269 = vld [vmem:[#allocation11 + $0x44] sm:$0xf]
        %v2270 = vld [vmem:[#allocation11 + $0x48] sm:$0xf]
        %v2271 = vld [vmem:[#allocation11 + $0x4c] sm:$0xf]
        %v2272 = vld [vmem:[#allocation11 + $0x50] sm:$0xf]
        %v2273 = vld [vmem:[#allocation11 + $0x54] sm:$0xf]
        %v2274 = vld [vmem:[#allocation11 + $0x58] sm:$0xf]
        %v2275 = vld [vmem:[#allocation11 + $0x5c] sm:$0xf]
        %v2276 = vld [vmem:[#allocation11 + $0x60] sm:$0xf]
        %v2277 = vld [vmem:[#allocation11 + $0x64] sm:$0xf]
        %v2278 = vld [vmem:[#allocation11 + $0x68] sm:$0xf]
        %v2279 = vld [vmem:[#allocation11 + $0x6c] sm:$0xf]
        %v2280 = vld [vmem:[#allocation11 + $0x70] sm:$0xf]
        %v2281 = vld [vmem:[#allocation11 + $0x74] sm:$0xf]
        %v2282 = vld [vmem:[#allocation11 + $0x78] sm:$0xf]
        %v2283 = vld [vmem:[#allocation11 + $0x7c] sm:$0xf]
        %v2316 = vunpack.c.l.b16 %v2252
        %v2317 = vunpack.c.l.b16 %v2253
        %v2318 = vunpack.c.l.b16 %v2254
        %v2319 = vunpack.c.l.b16 %v2255
        %v2320 = vunpack.c.l.b16 %v2256
        %v2321 = vunpack.c.l.b16 %v2257
        %v2322 = vunpack.c.l.b16 %v2258
        %v2323 = vunpack.c.l.b16 %v2259
        %v2324 = vunpack.c.l.b16 %v2260
        %v2325 = vunpack.c.l.b16 %v2261
        %v2326 = vunpack.c.l.b16 %v2262
        %v2327 = vunpack.c.l.b16 %v2263
        %v2328 = vunpack.c.l.b16 %v2264
        %v2329 = vunpack.c.l.b16 %v2265
        %v2330 = vunpack.c.l.b16 %v2266
        %v2331 = vunpack.c.l.b16 %v2267
        %v2332 = vunpack.c.l.b16 %v2268
        %v2333 = vunpack.c.l.b16 %v2269
        %v2334 = vunpack.c.l.b16 %v2270
        %v2335 = vunpack.c.l.b16 %v2271
        %v2336 = vunpack.c.l.b16 %v2272
        %v2337 = vunpack.c.l.b16 %v2273
        %v2338 = vunpack.c.l.b16 %v2274
        %v2339 = vunpack.c.l.b16 %v2275
        %v2340 = vunpack.c.l.b16 %v2276
        %v2341 = vunpack.c.l.b16 %v2277
        %v2342 = vunpack.c.l.b16 %v2278
        %v2343 = vunpack.c.l.b16 %v2279
        %v2344 = vunpack.c.l.b16 %v2280
        %v2345 = vunpack.c.l.b16 %v2281
        %v2346 = vunpack.c.l.b16 %v2282
        %v2347 = vunpack.c.l.b16 %v2283
        %v2348 = vpack.c.b16 %v2317, %v2316
        %v2349 = vpack.c.b16 %v2319, %v2318
        %v2350 = vpack.c.b16 %v2321, %v2320
        %v2351 = vpack.c.b16 %v2323, %v2322
        %v2352 = vpack.c.b16 %v2325, %v2324
        %v2353 = vpack.c.b16 %v2327, %v2326
        %v2354 = vpack.c.b16 %v2329, %v2328
        %v2355 = vpack.c.b16 %v2331, %v2330
        %v2356 = vpack.c.b16 %v2333, %v2332
        %v2357 = vpack.c.b16 %v2335, %v2334
        %v2358 = vpack.c.b16 %v2337, %v2336
        %v2359 = vpack.c.b16 %v2339, %v2338
        %v2360 = vpack.c.b16 %v2341, %v2340
        %v2361 = vpack.c.b16 %v2343, %v2342
        %v2362 = vpack.c.b16 %v2345, %v2344
        %v2363 = vpack.c.b16 %v2347, %v2346
        %2380 = vmatprep.subr.bf16.mxu0 0
        %2381 = vmatpush1.bf16.msra.mxu0 %v2348
        %2382 = vmatprep.subr.bf16.mxu0 0
        %2383 = vmatpush1.bf16.msra.mxu0 %v2349
        %2384 = vmatprep.subr.bf16.mxu0 0
        %2385 = vmatpush1.bf16.msra.mxu0 %v2350
        %2386 = vmatprep.subr.bf16.mxu0 0
        %2387 = vmatpush1.bf16.msra.mxu0 %v2351
        %2388 = vmatprep.subr.bf16.mxu0 0
        %2389 = vmatpush1.bf16.msra.mxu0 %v2352
        %2390 = vmatprep.subr.bf16.mxu0 0
        %2391 = vmatpush1.bf16.msra.mxu0 %v2353
        %2392 = vmatprep.subr.bf16.mxu0 0
        %2393 = vmatpush1.bf16.msra.mxu0 %v2354
        %2394 = vmatprep.subr.bf16.mxu0 0
        %2395 = vmatpush1.bf16.msra.mxu0 %v2355
        %2396 = vmatprep.subr.bf16.mxu0 0
        %2397 = vmatpush1.bf16.msra.mxu0 %v2356
        %2398 = vmatprep.subr.bf16.mxu0 0
        %2399 = vmatpush1.bf16.msra.mxu0 %v2357
        %2400 = vmatprep.subr.bf16.mxu0 0
        %2401 = vmatpush1.bf16.msra.mxu0 %v2358
        %2402 = vmatprep.subr.bf16.mxu0 0
        %2403 = vmatpush1.bf16.msra.mxu0 %v2359
        %2404 = vmatprep.subr.bf16.mxu0 0
        %2405 = vmatpush1.bf16.msra.mxu0 %v2360
        %2406 = vmatprep.subr.bf16.mxu0 0
        %2407 = vmatpush1.bf16.msra.mxu0 %v2361
        %2408 = vmatprep.subr.bf16.mxu0 0
        %2409 = vmatpush1.bf16.msra.mxu0 %v2362
        %2410 = vmatprep.subr.bf16.mxu0 0
        %2411 = vmatpush1.bf16.msra.mxu0 %v2363
        %2412 = vmatprep.mubr.bf16.mxu0 %v2245
        %2413 = vmatmul.mubr.bf16.gmra.mrb[0].mxu0 %v2244
        %v2414 = vpop.f32.mrb[0].mxu0
        %v2415 = vadd.f32 %v606, %v2414
        %v2416 = vpop.f32.mrb[0].mxu0
        %v2417 = vpop.f32.mrb[0].mxu0
        %v2418 = vadd.f32 %v606, %v2417
        %v2419 = vpop.f32.mrb[0].mxu0
        %2420 = vmatprep.mubr.bf16.mxu0 %v2247
        %2421 = vmatmul.mubr.bf16.gmra.mrb[0].mxu0 %v2246
        %v2422 = vpop.f32.mrb[0].mxu0
        %v2423 = vadd.f32 %v606, %v2422
        %v2424 = vpop.f32.mrb[0].mxu0
        %v2425 = vpop.f32.mrb[0].mxu0
        %v2426 = vadd.f32 %v606, %v2425
        %v2427 = vpop.f32.mrb[0].mxu0
        %2428 = vmatprep.mubr.bf16.mxu0 %v2249
        %2429 = vmatmul.mubr.bf16.gmra.mrb[0].mxu0 %v2248
        %v2430 = vpop.f32.mrb[0].mxu0
        %v2431 = vadd.f32 %v606, %v2430
        %v2432 = vpop.f32.mrb[0].mxu0
        %v2433 = vpop.f32.mrb[0].mxu0
        %v2434 = vadd.f32 %v606, %v2433
        %v2435 = vpop.f32.mrb[0].mxu0
        %2436 = vmatprep.mubr.bf16.mxu0 %v2251
        %2437 = vmatmul.mubr.bf16.gmra.mrb[0].mxu0 %v2250
        %v2438 = vpop.f32.mrb[0].mxu0
        %v2439 = vadd.f32 %v606, %v2438
        %v2440 = vpop.f32.mrb[0].mxu0
        %v2441 = vpop.f32.mrb[0].mxu0
        %v2442 = vadd.f32 %v606, %v2441
        %v2443 = vpop.f32.mrb[0].mxu0
        %2444 = vdwg.mxu0
        %2445 = vst [vmem:[%s442] sm:$0xff] %v2415
        %2446 = vst [vmem:[%s442 + $0x8] sm:$0xff] %v2418
        %2447 = vst [vmem:[%s442 + $0x10] sm:$0xff] %v2423
        %2448 = vst [vmem:[%s442 + $0x18] sm:$0xff] %v2426
        %2449 = vst [vmem:[%s442 + $0x20] sm:$0xff] %v2431
        %2450 = vst [vmem:[%s442 + $0x28] sm:$0xff] %v2434
        %2451 = vst [vmem:[%s442 + $0x30] sm:$0xff] %v2439
        %2452 = vst [vmem:[%s442 + $0x38] sm:$0xff] %v2442
        %s2453 = sand.u32 %s206, 1
        %s2454 = scalar_lea.sflag [#allocation4], %s2453
        %s2455 = sand.u32 %s206, 1
        %s2456 = smul.addr %s2455, 64
        %s2457 = scalar_lea.vmem [#allocation13], %s2456
        // Predicated region
        $region73: #{tpu_custom_call.1} parent=47 // pred_check
          %p2458 = pneg %p216
        $region74: #{tpu_custom_call.1} parent=47 // pred_check_branch
          %2460 = sbr.rel (%p2458) target = $region76
        $region75: #{tpu_custom_call.1} parent=47 // pred_region
          %s2461 = smul.u32 8, %s31
          %s2463 = ssub.s32 1024, 1024
          %2464 = vsyncadd %s2454, %s2463
          %s2465 = smul.addr %s2461, 128
          %s2466 = scalar_lea.hbm %s7, %s2465
          %s2467 = sshll.u32 %s2457, 4
          %s2468 = int_to_ptr.vmem [resolvable:$true] %s2467
          %2473 = dma.vmem_to_hbm [thread:$0]  %s2468, 1024, %s2466, %s2454, 128, 128, 8
        $region76: #{tpu_custom_call.1} parent=47 // pred_fallthru
          _
      $region48: #{tpu_custom_call.1} parent=5 // pred_fallthru
        _
      %p2474 = scmp.le.s32.totalorder 2, %s26
      // Predicated region
      $region77: #{tpu_custom_call.1} parent=5 // pred_check
        %p2475 = pneg %p2474
      $region78: #{tpu_custom_call.1} parent=5 // pred_check_branch
        %2477 = sbr.rel (%p2475) target = $region80
      $region79: #{tpu_custom_call.1} parent=5 // pred_region
        %s2478 = ssub.s32 %s26, 2
        // Predicated region
        $region81: #{tpu_custom_call.1} parent=79 // pred_check
          %p2479 = pneg %p222
        $region82: #{tpu_custom_call.1} parent=79 // pred_check_branch
          %2481 = sbr.rel (%p2479) target = $region84
        $region83: #{tpu_custom_call.1} parent=79 // pred_region
          %s2482 = sand.u32 %s207, 1
          %s2483 = scalar_lea.sflag [#allocation4], %s2482
          %s2484 = sand.u32 %s207, 1
          %s2485 = smul.addr %s2484, 64
          %s2486 = scalar_lea.vmem [#allocation13], %s2485
          %2487 = dma.done %s2483, 1024
        $region84: #{tpu_custom_call.1} parent=79 // pred_fallthru
          _
      $region80: #{tpu_custom_call.1} parent=5 // pred_fallthru
        _
    $region6: #{tpu_custom_call.1} parent=1 // loop_footer
      %s30 = sadd.s32 1, %s26
    $region7: #{tpu_custom_call.1} parent=1 // loop_footer_branch
      %25 = sbr.rel target = $region3
    $region8: #{tpu_custom_call.1} parent=1 // loop_exit
      _
    %2488 = vsyncpa [#allocation3], 1
    %s2489 = scalar_lea.sflag [#allocation3], 1
    %2490 = vsyncpa %s2489, 1
    %2491 = vsyncpa [#allocation6], 1
    %s2492 = scalar_lea.sflag [#allocation6], 1
    %2493 = vsyncpa %s2492, 1
    %2494 = vsyncpa [#allocation9], 1
    %s2495 = scalar_lea.sflag [#allocation9], 1
    %2496 = vsyncpa %s2495, 1
    %2497 = vsyncpa [#allocation12], 1
    %2498 = vsyncpa [#allocation4], 1
    %s2499 = scalar_lea.sflag [#allocation4], 1
    %2500 = vsyncpa %s2499, 1

</llo_original>
